<compile_context>
chip_gen: v7x
topology: tpu7x:2x2x1
jax: 0.10.0
libtpu: 0.0.40
codegen_flags: <defaults>
</compile_context>

<pallas_src>
import jax
import jax.numpy as jnp
from jax.experimental import pallas as pl
from jax.experimental.pallas import tpu as pltpu

_LANE = 128


def _round_up(x: int, m: int) -> int:
    return (x + m - 1) // m * m


# ----------------------------------------------------------------------------
# Parameter preparation (host side, float32)
# ----------------------------------------------------------------------------
def fold_batchnorm(w, b, gamma, beta, mean, var, eps=1e-5):
    """Fold an inference-mode BatchNorm1d into the preceding Linear.

    w: [in, out], b: [out]; BN parameters are over the `out` dimension.
    Done in float32, eps inside the sqrt (exactly like PyTorch)."""
    scale = gamma / jnp.sqrt(var + eps)
    w_f = (w * scale[None, :]).astype(jnp.float32)
    b_f = ((b - mean) * scale + beta).astype(jnp.float32)
    return w_f, b_f


def init_mlp_params(key, in_dim, hidden, out_dim, num_layers=4, eps=1e-5):
    """Deterministic parameters for a PyG-style MLP (plain_last=True).

    Returns (raw_layers, folded_layers):
      raw_layers   : list of {"w","b","bn"} dicts for the pure-f32 reference.
      folded_layers: list of (W [in,out] f32, b [out] f32) with BN folded in.
    """
    dims = [in_dim] + [hidden] * (num_layers - 1) + [out_dim]
    raw, folded = [], []
    for li in range(num_layers):
        key, kw, kb, kg, kbt, km, kv = jax.random.split(key, 7)
        lim = 1.0 / float(dims[li]) ** 0.5
        w = jax.random.uniform(kw, (dims[li], dims[li + 1]), jnp.float32, -lim, lim)
        b = jax.random.uniform(kb, (dims[li + 1],), jnp.float32, -lim, lim)
        if li < num_layers - 1:      # Linear -> BatchNorm -> ReLU
            gamma = jax.random.uniform(kg, (dims[li + 1],), jnp.float32, 0.5, 1.5)
            beta = 0.1 * jax.random.normal(kbt, (dims[li + 1],), jnp.float32)
            mean = 0.1 * jax.random.normal(km, (dims[li + 1],), jnp.float32)
            var = jax.random.uniform(kv, (dims[li + 1],), jnp.float32, 0.5, 1.5)
            raw.append({"w": w, "b": b, "bn": (gamma, beta, mean, var, eps)})
            folded.append(fold_batchnorm(w, b, gamma, beta, mean, var, eps))
        else:                        # plain last Linear (plain_last=True)
            raw.append({"w": w, "b": b, "bn": None})
            folded.append((w, b))
    return raw, folded


def prepare_mlp_params(folded_layers):
    """Pad only the *hidden* widths to 128 lanes; cast weights to bf16.

    The input width (first K) and the output width stay natural: the input
    block's last dim equals the full array dim (allowed by the TPU layout
    rules) and the output is written at its natural column width.  Zero
    padding of extra hidden columns is exact: padded activations are
    ReLU(0)=0 and hit zero weight rows in the next layer."""
    num_layers = len(folded_layers)
    in_dim = folded_layers[0][0].shape[0]
    out_dim = folded_layers[-1][0].shape[1]

    dims = [in_dim]
    for li, (w, _) in enumerate(folded_layers):
        if li < num_layers - 1:
            dims.append(_round_up(max(w.shape[1], 1), _LANE))   # hidden: lane-pad
        else:
            dims.append(out_dim)                                # last: natural

    ws, bs = [], []
    for li, (w, b) in enumerate(folded_layers):
        k, n = w.shape
        kp, np_ = dims[li], dims[li + 1]
        wp = jnp.zeros((kp, np_), jnp.float32).at[:k, :n].set(w)
        bp = jnp.zeros((1, np_), jnp.float32).at[:, :n].set(b)
        ws.append(wp.astype(jnp.bfloat16))   # bf16 MXU feed
        bs.append(bp)                        # f32 epilogue
    return {
        "ws": tuple(ws),
        "bs": tuple(bs),
        "dims": tuple(dims),
        "in_dim": in_dim,
        "out_dim": out_dim,
    }


# ----------------------------------------------------------------------------
# Pallas kernel: whole num_layers-deep MLP on one resident row tile
# ----------------------------------------------------------------------------
def _make_mlp_kernel(num_layers):
    def kernel(*refs):
        # refs = (x, w0, b0, ..., w{L-1}, b{L-1}, out)
        x_ref = refs[0]
        o_ref = refs[1 + 2 * num_layers]

        h = x_ref[...].astype(jnp.bfloat16)                    # [TR, D_in] bf16
        for li in range(num_layers):
            w_ref = refs[1 + 2 * li]
            b_ref = refs[2 + 2 * li]
            acc = jnp.dot(h, w_ref[...],
                          preferred_element_type=jnp.float32) + b_ref[...]
            if li < num_layers - 1:
                # Keep the activation as a value: bias+ReLU+cast fuse into the
                # MXU-result epilogue (no f32 VMEM store/reload round-trip).
                h = jnp.maximum(acc, 0.0).astype(jnp.bfloat16)
            else:
                o_ref[...] = acc                               # natural-width f32 store
    return kernel


def _mlp_apply_xla(x, prep):
    """Plain-XLA version of the exact kernel math (tiny row counts + as a
    plumbing reference for the Pallas kernel)."""
    h = x.astype(jnp.bfloat16)
    n = len(prep["ws"])
    for li in range(n):
        h32 = jnp.dot(h, prep["ws"][li],
                      preferred_element_type=jnp.float32) + prep["bs"][li]
        if li < n - 1:
            h = jnp.maximum(h32, 0.0).astype(jnp.bfloat16)
        else:
            h = h32
    return h


def fused_mlp(x, prep, *, tile_rows=256, min_tile_rows=128, min_pallas_rows=64):
    """Apply a prepared (BN-folded, lane-padded-hidden, bf16) MLP to x: [R, D_in]."""
    R, d_in = x.shape
    assert d_in == prep["in_dim"]
    if R < min_pallas_rows:
        # Tiny row counts (e.g. per-graph globals): Pallas launch + pipeline
        # warm-up dominates -> plain XLA with the same folded math.
        return _mlp_apply_xla(x, prep)

    dims = prep["dims"]
    num_layers = len(prep["ws"])
    out_dim = prep["out_dim"]

    # Row tile: aim for >= 4 grid steps (so on v7x both TensorCores get >= 2
    # steps each and input/weight DMA hides behind compute), clamp to
    # [min_tile_rows, tile_rows], never exceed the (sublane-rounded) row count.
    tr = _round_up(max(1, -(-R // 4)), 8)
    tr = max(min(tr, tile_rows), min_tile_rows)
    if tr > R:
        tr = _round_up(R, 8)
    grid = (pl.cdiv(R, tr),)   # last tile may be partial; Pallas masks it

    row_map = lambda i: (i, 0)
    const_map = lambda i: (0, 0)   # constant index -> weights stay resident in VMEM

    in_specs = [pl.BlockSpec((tr, d_in), row_map)]   # natural width, no HBM padding
    operands = [x]
    for li in range(num_layers):
        kp, np_ = dims[li], dims[li + 1]
        in_specs.append(pl.BlockSpec((kp, np_), const_map))
        in_specs.append(pl.BlockSpec((1, np_), const_map))
        operands.append(prep["ws"][li])
        operands.append(prep["bs"][li])

    return pl.pallas_call(
        _make_mlp_kernel(num_layers),
        out_shape=jax.ShapeDtypeStruct((R, out_dim), jnp.float32),
        grid_spec=pltpu.PrefetchScalarGridSpec(
            num_scalar_prefetch=0,
            grid=grid,
            in_specs=in_specs,
            out_specs=pl.BlockSpec((tr, out_dim), row_map),
        ),
        compiler_params=pltpu.CompilerParams(
            dimension_semantics=("parallel",)),  # shard row tiles over v7x's 2 TCs
    )(*operands)


def _mlp_reference_f32(x, raw_layers):
    """Pure-float32 reference of the PyG MLP (Linear -> BN(eval) -> ReLU,
    plain last) for a semantic sanity check."""
    h = x.astype(jnp.float32)
    for layer in raw_layers:
        h = h @ layer["w"] + layer["b"]
        if layer["bn"] is not None:
            gamma, beta, mean, var, eps = layer["bn"]
            h = (h - mean) / jnp.sqrt(var + eps) * gamma + beta
            h = jnp.maximum(h, 0.0)
    return h


# ----------------------------------------------------------------------------
# MLPGraphIndependent
# ----------------------------------------------------------------------------
class MLPGraphIndependentPallas:
    def __init__(self, key, edge_in_dim, node_in_dim, global_in_dim,
                 edge_output_size, node_output_size, global_output_size,
                 mlp_channels=128, mlp_layers=4, norm="batch_norm",
                 encoder=True):
        if norm != "batch_norm":
            # TODO(synk): graph_norm / layer_norm variants are not implemented.
            raise NotImplementedError(
                "only norm='batch_norm' (inference mode, folded) is implemented")
        # `encoder` only changes behaviour for norm='graph_norm'; with
        # batch_norm the batch / edgepos indices are not consumed (matches the
        # reference).  `global_output_size` is accepted but unused: the
        # reference builds the global MLP with node_output_size (quirk kept).
        del encoder, global_output_size

        ke, kn, kg = jax.random.split(key, 3)
        self.edge_raw, edge_folded = init_mlp_params(
            ke, edge_in_dim, mlp_channels, edge_output_size, mlp_layers)
        self.node_raw, node_folded = init_mlp_params(
            kn, node_in_dim, mlp_channels, node_output_size, mlp_layers)
        self.global_raw, global_folded = init_mlp_params(
            kg, global_in_dim, mlp_channels, node_output_size, mlp_layers)

        self.edge_prep = prepare_mlp_params(edge_folded)
        self.node_prep = prepare_mlp_params(node_folded)
        self.global_prep = prepare_mlp_params(global_folded)

    def __call__(self, graph):
        out = dict(graph)   # senders / receivers / batch / edgepos pass through
        out["edges"] = fused_mlp(graph["edges"], self.edge_prep)
        out["nodes"] = fused_mlp(graph["nodes"], self.node_prep)
        out["graph_globals"] = fused_mlp(graph["graph_globals"],
                                         self.global_prep)
        return out


# ----------------------------------------------------------------------------
# Demo / self-test
# ----------------------------------------------------------------------------
if __name__ == "__main__":
    key = jax.random.PRNGKey(0)
    k_model, k_e, k_n, k_g, k_s, k_r, k_p = jax.random.split(key, 7)

    num_graphs, num_nodes, num_edges = 4, 512, 2048
    d_edge, d_node, d_global = 16, 24, 8
    edge_out, node_out, global_out = 32, 32, 16
    mlp_channels, mlp_layers = 128, 4

    graph = {
        "edges": jax.random.normal(k_e, (num_edges, d_edge), jnp.float32),
        "nodes": jax.random.normal(k_n, (num_nodes, d_node), jnp.float32),
        "graph_globals": jax.random.normal(k_g, (num_graphs, d_global), jnp.float32),
        "senders": jax.random.randint(k_s, (num_edges,), 0, num_nodes),
        "receivers": jax.random.randint(k_r, (num_edges,), 0, num_nodes),
        "batch": jnp.repeat(jnp.arange(num_graphs), num_nodes // num_graphs),
        "edgepos": jax.random.randint(k_p, (num_edges,), 0, num_graphs),
    }

    model = MLPGraphIndependentPallas(
        k_model, d_edge, d_node, d_global,
        edge_output_size=edge_out, node_output_size=node_out,
        global_output_size=global_out,
        mlp_channels=mlp_channels, mlp_layers=mlp_layers,
        norm="batch_norm", encoder=True)

    out = model(graph)
    jax.block_until_ready((out["edges"], out["nodes"], out["graph_globals"]))

    # Shape checks (incl. the global-output-size quirk of the reference code).
    assert out["edges"].shape == (num_edges, edge_out)
    assert out["nodes"].shape == (num_nodes, node_out)
    assert out["graph_globals"].shape == (num_graphs, node_out)

    # Plumbing check: Pallas kernel vs identical bf16/f32 math in plain XLA.
    ref_e = _mlp_apply_xla(graph["edges"], model.edge_prep)
    ref_n = _mlp_apply_xla(graph["nodes"], model.node_prep)
    assert jnp.allclose(out["edges"], ref_e, atol=1e-2, rtol=1e-2), "edge MLP plumbing mismatch"
    assert jnp.allclose(out["nodes"], ref_n, atol=1e-2, rtol=1e-2), "node MLP plumbing mismatch"

    # Semantic check vs a pure-f32 Linear->BN->ReLU reference (bf16 tolerance).
    sem_e = _mlp_reference_f32(graph["edges"], model.edge_raw)
    sem_n = _mlp_reference_f32(graph["nodes"], model.node_raw)
    sem_g = _mlp_reference_f32(graph["graph_globals"], model.global_raw)
    assert jnp.allclose(out["edges"], sem_e, atol=1e-1, rtol=1e-1), "edge MLP semantic mismatch"
    assert jnp.allclose(out["nodes"], sem_n, atol=1e-1, rtol=1e-1), "node MLP semantic mismatch"
    assert jnp.allclose(out["graph_globals"], sem_g, atol=1e-1, rtol=1e-1), "global MLP semantic mismatch"

    print("KERNEL_OK")
</pallas_src>

<mosaic_0001>
module attributes {stable_mosaic.version = 11 : i64} {
  func.func @kernel(%arg0: i32, %arg1: memref<256x16xf32, #tpu.memory_space<vmem>>, %arg2: memref<16x128xbf16, #tpu.memory_space<vmem>>, %arg3: memref<1x128xf32, #tpu.memory_space<vmem>>, %arg4: memref<128x128xbf16, #tpu.memory_space<vmem>>, %arg5: memref<1x128xf32, #tpu.memory_space<vmem>>, %arg6: memref<128x128xbf16, #tpu.memory_space<vmem>>, %arg7: memref<1x128xf32, #tpu.memory_space<vmem>>, %arg8: memref<128x32xbf16, #tpu.memory_space<vmem>>, %arg9: memref<1x32xf32, #tpu.memory_space<vmem>>, %arg10: memref<256x32xf32, #tpu.memory_space<vmem>>) attributes {dimension_semantics = [#tpu.dimension_semantics<parallel>], iteration_bounds = array<i64: 8>, scalar_prefetch = 0 : i64, scratch_operands = 0 : i64, tpu.core_type = #tpu.core_type<tc>, window_params = [{transform_indices = @transform_0, window_bounds = array<i64: 256, 16>}, {pipeline_mode = #tpu.pipeline_mode<synchronous>, transform_indices = @transform_1, window_bounds = array<i64: 16, 128>}, {pipeline_mode = #tpu.pipeline_mode<synchronous>, transform_indices = @transform_2, window_bounds = array<i64: 1, 128>}, {pipeline_mode = #tpu.pipeline_mode<synchronous>, transform_indices = @transform_3, window_bounds = array<i64: 128, 128>}, {pipeline_mode = #tpu.pipeline_mode<synchronous>, transform_indices = @transform_4, window_bounds = array<i64: 1, 128>}, {pipeline_mode = #tpu.pipeline_mode<synchronous>, transform_indices = @transform_5, window_bounds = array<i64: 128, 128>}, {pipeline_mode = #tpu.pipeline_mode<synchronous>, transform_indices = @transform_6, window_bounds = array<i64: 1, 128>}, {pipeline_mode = #tpu.pipeline_mode<synchronous>, transform_indices = @transform_7, window_bounds = array<i64: 128, 32>}, {pipeline_mode = #tpu.pipeline_mode<synchronous>, transform_indices = @transform_8, window_bounds = array<i64: 1, 32>}, {transform_indices = @transform_9, window_bounds = array<i64: 256, 32>}]} {
    %c0 = arith.constant 0 : index
    %c0_0 = arith.constant 0 : index
    %0 = vector.load %arg1[%c0, %c0_0] : memref<256x16xf32, #tpu.memory_space<vmem>>, vector<256x16xf32>
    %1 = arith.truncf %0 : vector<256x16xf32> to vector<256x16xbf16>
    %c0_1 = arith.constant 0 : index
    %c0_2 = arith.constant 0 : index
    %2 = vector.load %arg2[%c0_1, %c0_2] : memref<16x128xbf16, #tpu.memory_space<vmem>>, vector<16x128xbf16>
    %cst = arith.constant dense<0.000000e+00> : vector<256x128xf32>
    %3 = tpu.matmul %1, %2, %cst {dimension_numbers = #tpu.dot_dimension_numbers<[1], [0], [0], [1], [0, 0, 1, 1], [], []>} : vector<256x16xbf16>, vector<16x128xbf16>, vector<256x128xf32> -> vector<256x128xf32>
    %c0_3 = arith.constant 0 : index
    %c0_4 = arith.constant 0 : index
    %4 = vector.load %arg3[%c0_3, %c0_4] : memref<1x128xf32, #tpu.memory_space<vmem>>, vector<1x128xf32>
    %5 = vector.broadcast %4 : vector<1x128xf32> to vector<256x128xf32>
    %6 = arith.addf %3, %5 : vector<256x128xf32>
    %cst_5 = arith.constant 0.000000e+00 : f32
    %7 = vector.broadcast %cst_5 : f32 to vector<256x128xf32>
    %8 = arith.maximumf %6, %7 : vector<256x128xf32>
    %9 = arith.truncf %8 : vector<256x128xf32> to vector<256x128xbf16>
    %c0_6 = arith.constant 0 : index
    %c0_7 = arith.constant 0 : index
    %10 = vector.load %arg4[%c0_6, %c0_7] : memref<128x128xbf16, #tpu.memory_space<vmem>>, vector<128x128xbf16>
    %cst_8 = arith.constant dense<0.000000e+00> : vector<256x128xf32>
    %11 = tpu.matmul %9, %10, %cst_8 {dimension_numbers = #tpu.dot_dimension_numbers<[1], [0], [0], [1], [0, 0, 1, 1], [], []>} : vector<256x128xbf16>, vector<128x128xbf16>, vector<256x128xf32> -> vector<256x128xf32>
    %c0_9 = arith.constant 0 : index
    %c0_10 = arith.constant 0 : index
    %12 = vector.load %arg5[%c0_9, %c0_10] : memref<1x128xf32, #tpu.memory_space<vmem>>, vector<1x128xf32>
    %13 = vector.broadcast %12 : vector<1x128xf32> to vector<256x128xf32>
    %14 = arith.addf %11, %13 : vector<256x128xf32>
    %cst_11 = arith.constant 0.000000e+00 : f32
    %15 = vector.broadcast %cst_11 : f32 to vector<256x128xf32>
    %16 = arith.maximumf %14, %15 : vector<256x128xf32>
    %17 = arith.truncf %16 : vector<256x128xf32> to vector<256x128xbf16>
    %c0_12 = arith.constant 0 : index
    %c0_13 = arith.constant 0 : index
    %18 = vector.load %arg6[%c0_12, %c0_13] : memref<128x128xbf16, #tpu.memory_space<vmem>>, vector<128x128xbf16>
    %cst_14 = arith.constant dense<0.000000e+00> : vector<256x128xf32>
    %19 = tpu.matmul %17, %18, %cst_14 {dimension_numbers = #tpu.dot_dimension_numbers<[1], [0], [0], [1], [0, 0, 1, 1], [], []>} : vector<256x128xbf16>, vector<128x128xbf16>, vector<256x128xf32> -> vector<256x128xf32>
    %c0_15 = arith.constant 0 : index
    %c0_16 = arith.constant 0 : index
    %20 = vector.load %arg7[%c0_15, %c0_16] : memref<1x128xf32, #tpu.memory_space<vmem>>, vector<1x128xf32>
    %21 = vector.broadcast %20 : vector<1x128xf32> to vector<256x128xf32>
    %22 = arith.addf %19, %21 : vector<256x128xf32>
    %cst_17 = arith.constant 0.000000e+00 : f32
    %23 = vector.broadcast %cst_17 : f32 to vector<256x128xf32>
    %24 = arith.maximumf %22, %23 : vector<256x128xf32>
    %25 = arith.truncf %24 : vector<256x128xf32> to vector<256x128xbf16>
    %c0_18 = arith.constant 0 : index
    %c0_19 = arith.constant 0 : index
    %26 = vector.load %arg8[%c0_18, %c0_19] : memref<128x32xbf16, #tpu.memory_space<vmem>>, vector<128x32xbf16>
    %cst_20 = arith.constant dense<0.000000e+00> : vector<256x32xf32>
    %27 = tpu.matmul %25, %26, %cst_20 {dimension_numbers = #tpu.dot_dimension_numbers<[1], [0], [0], [1], [0, 0, 1, 1], [], []>} : vector<256x128xbf16>, vector<128x32xbf16>, vector<256x32xf32> -> vector<256x32xf32>
    %c0_21 = arith.constant 0 : index
    %c0_22 = arith.constant 0 : index
    %28 = vector.load %arg9[%c0_21, %c0_22] : memref<1x32xf32, #tpu.memory_space<vmem>>, vector<1x32xf32>
    %29 = vector.broadcast %28 : vector<1x32xf32> to vector<256x32xf32>
    %30 = arith.addf %27, %29 : vector<256x32xf32>
    %c0_23 = arith.constant 0 : index
    %c0_24 = arith.constant 0 : index
    %31 = vector.load %arg10[%c0_23, %c0_24] : memref<256x32xf32, #tpu.memory_space<vmem>>, vector<256x32xf32>
    tpu.vector_store %arg10[%c0_23, %c0_24], %30 {strides = array<i32>} : memref<256x32xf32, #tpu.memory_space<vmem>>, vector<256x32xf32>,
    return
  }
  func.func @transform_0(%arg0: i32) -> (i32, i32) {
    %c0_i32 = arith.constant 0 : i32
    %c0_i32_0 = arith.constant 0 : i32
    return %arg0, %c0_i32 : i32, i32
  }
  func.func @transform_1(%arg0: i32) -> (i32, i32) {
    %c0_i32 = arith.constant 0 : i32
    %c0_i32_0 = arith.constant 0 : i32
    %c0_i32_1 = arith.constant 0 : i32
    return %c0_i32, %c0_i32_0 : i32, i32
  }
  func.func @transform_2(%arg0: i32) -> (i32, i32) {
    %c0_i32 = arith.constant 0 : i32
    %c0_i32_0 = arith.constant 0 : i32
    %c0_i32_1 = arith.constant 0 : i32
    return %c0_i32, %c0_i32_0 : i32, i32
  }
  func.func @transform_3(%arg0: i32) -> (i32, i32) {
    %c0_i32 = arith.constant 0 : i32
    %c0_i32_0 = arith.constant 0 : i32
    %c0_i32_1 = arith.constant 0 : i32
    return %c0_i32, %c0_i32_0 : i32, i32
  }
  func.func @transform_4(%arg0: i32) -> (i32, i32) {
    %c0_i32 = arith.constant 0 : i32
    %c0_i32_0 = arith.constant 0 : i32
    %c0_i32_1 = arith.constant 0 : i32
    return %c0_i32, %c0_i32_0 : i32, i32
  }
  func.func @transform_5(%arg0: i32) -> (i32, i32) {
    %c0_i32 = arith.constant 0 : i32
    %c0_i32_0 = arith.constant 0 : i32
    %c0_i32_1 = arith.constant 0 : i32
    return %c0_i32, %c0_i32_0 : i32, i32
  }
  func.func @transform_6(%arg0: i32) -> (i32, i32) {
    %c0_i32 = arith.constant 0 : i32
    %c0_i32_0 = arith.constant 0 : i32
    %c0_i32_1 = arith.constant 0 : i32
    return %c0_i32, %c0_i32_0 : i32, i32
  }
  func.func @transform_7(%arg0: i32) -> (i32, i32) {
    %c0_i32 = arith.constant 0 : i32
    %c0_i32_0 = arith.constant 0 : i32
    %c0_i32_1 = arith.constant 0 : i32
    return %c0_i32, %c0_i32_0 : i32, i32
  }
  func.func @transform_8(%arg0: i32) -> (i32, i32) {
    %c0_i32 = arith.constant 0 : i32
    %c0_i32_0 = arith.constant 0 : i32
    %c0_i32_1 = arith.constant 0 : i32
    return %c0_i32, %c0_i32_0 : i32, i32
  }
  func.func @transform_9(%arg0: i32) -> (i32, i32) {
    %c0_i32 = arith.constant 0 : i32
    %c0_i32_0 = arith.constant 0 : i32
    return %arg0, %c0_i32 : i32, i32
  }
}

</mosaic_0001>

<llo_original>
// kernel: tpu_custom_call.1
$region0: #{tpu_custom_call.1}
  #allocation0 [shape = 'u32[]', space=smem, size = 0x4, offset = 0x4, fixed_abs, tag = 'smem constant byte address 0x4 - core index']
  #allocation1 [shape = 'u32[144,128]{1,0:T(1,128)}', space=vmem, size = 0x12000, scoped, tag = 'internal scratch']
  %s0 = inlined_call_operand.vmem [shape: f32[2048,16], index: 0, kind: input, shape index: {}]
  %s1 = inlined_call_operand.vmem [shape: bf16[16,128], index: 1, kind: input, shape index: {}]
  %s2 = inlined_call_operand.vmem [shape: f32[1,128], index: 2, kind: input, shape index: {}]
  %s3 = inlined_call_operand.vmem [shape: bf16[128,128], index: 3, kind: input, shape index: {}]
  %s4 = inlined_call_operand.vmem [shape: f32[1,128], index: 4, kind: input, shape index: {}]
  %s5 = inlined_call_operand.vmem [shape: bf16[128,128], index: 5, kind: input, shape index: {}]
  %s6 = inlined_call_operand.vmem [shape: f32[1,128], index: 6, kind: input, shape index: {}]
  %s7 = inlined_call_operand.vmem [shape: bf16[128,32], index: 7, kind: input, shape index: {}]
  %s8 = inlined_call_operand.vmem [shape: f32[1,32], index: 8, kind: input, shape index: {}]
  %s9 = inlined_call_operand.vmem [shape: f32[2048,32], index: 9, kind: output, shape index: {}]
  %s10 = sld [smem:[#allocation0]]
  $region69: #{tpu_custom_call.1} parent=0
    _
  %s12 = ssub.s32 1, %s10
  %s13 = scalar_select 0, %s12, %s10
  loop: start=0, step=1, limit=10
  $region2: #{tpu_custom_call.1} parent=0 // loop_pre_header
    _
  $region3: #{tpu_custom_call.1} parent=0 // loop_header
    %s15 = sphi 0, %s19
    %p16 = scmp.ge.s32.totalorder %s15, 10
    %s25 = sphi 0, %s27
    %s28 = sphi 0, %s25
    %s29 = sphi 0, %s28
    %s45 = sphi 0, %s29
    %s49 = sphi 0, %s49
    %s51 = sphi 0, %s49
    %s52 = sphi 0, %s51
    %s66 = sphi 0, %s52
    %s70 = sphi 0, %s70
    %s72 = sphi 0, %s70
    %s73 = sphi 0, %s72
    %s87 = sphi 0, %s73
    %s91 = sphi 0, %s91
    %s93 = sphi 0, %s91
    %s94 = sphi 0, %s93
    %s108 = sphi 0, %s94
    %s112 = sphi 0, %s112
    %s114 = sphi 0, %s112
    %s115 = sphi 0, %s114
    %s129 = sphi 0, %s115
    %s133 = sphi 0, %s133
    %s135 = sphi 0, %s133
    %s136 = sphi 0, %s135
    %s150 = sphi 0, %s136
    %s154 = sphi 0, %s154
    %s156 = sphi 0, %s154
    %s157 = sphi 0, %s156
    %s171 = sphi 0, %s157
    %s175 = sphi 0, %s175
    %s177 = sphi 0, %s175
    %s178 = sphi 0, %s177
    %s192 = sphi 0, %s178
    %s196 = sphi 0, %s196
    %s198 = sphi 0, %s196
    %s199 = sphi 0, %s198
    %s213 = sphi 0, %s199
    %s219 = sphi 0, %s221
    %s222 = sphi 0, %s219
    %s223 = sphi 0, %s222
    %s239 = sphi 0, %s223
  $region4: #{tpu_custom_call.1} parent=0 // loop_header_branch
    %18 = sbr.rel (%p16) target = $region8
  $region5: #{tpu_custom_call.1} parent=0 // loop_body
    %s20 = ssub.s32 %s15, 1
    %s21 = ssub.s32 %s15, 2
    %s22 = sadd.s32 %s15, 1
    %s23 = ssub.s32 %s15, %s22
    %p24 = scmp.eq.s32.totalorder %s23, 0
    %s26 = sadd.s32 %s25, 1
    %s27 = scalar_select %p24, %s25, %s26
    %p30 = pneg %p24
    %p31 = scmp.eq.s32.totalorder %s15, 7
    %p32 = por %p30, %p31
    %p33 = scmp.ne.s32.totalorder %s25, %s28
    %p34 = scmp.eq.s32.totalorder %s15, 0
    %p35 = por %p33, %p34
    %p36 = scmp.ne.s32.totalorder %s25, %s28
    %p37 = scmp.eq.s32.totalorder %s20, 7
    %p38 = por %p36, %p37
    %p39 = scmp.ne.s32.totalorder %s28, %s29
    %p40 = scmp.eq.s32.totalorder %s20, 0
    %p41 = por %p39, %p40
    %p42 = scmp.ne.s32.totalorder %s28, %s29
    %p43 = scmp.eq.s32.totalorder %s21, 7
    %p44 = por %p42, %p43
    %p46 = scmp.ne.s32.totalorder %s29, %s45
    %p47 = scmp.eq.s32.totalorder %s21, 0
    %p48 = por %p46, %p47
    %s50 = sadd.s32 %s49, 1
    %p53 = scmp.eq.s32.totalorder %s15, 7
    %p54 = scmp.ne.s32.totalorder %s49, %s51
    %p55 = scmp.eq.s32.totalorder %s15, 0
    %p56 = por %p54, %p55
    %p57 = scmp.ne.s32.totalorder %s49, %s51
    %p58 = scmp.eq.s32.totalorder %s20, 7
    %p59 = por %p57, %p58
    %p60 = scmp.ne.s32.totalorder %s51, %s52
    %p61 = scmp.eq.s32.totalorder %s20, 0
    %p62 = por %p60, %p61
    %p63 = scmp.ne.s32.totalorder %s51, %s52
    %p64 = scmp.eq.s32.totalorder %s21, 7
    %p65 = por %p63, %p64
    %p67 = scmp.ne.s32.totalorder %s52, %s66
    %p68 = scmp.eq.s32.totalorder %s21, 0
    %p69 = por %p67, %p68
    %s71 = sadd.s32 %s70, 1
    %p74 = scmp.eq.s32.totalorder %s15, 7
    %p75 = scmp.ne.s32.totalorder %s70, %s72
    %p76 = scmp.eq.s32.totalorder %s15, 0
    %p77 = por %p75, %p76
    %p78 = scmp.ne.s32.totalorder %s70, %s72
    %p79 = scmp.eq.s32.totalorder %s20, 7
    %p80 = por %p78, %p79
    %p81 = scmp.ne.s32.totalorder %s72, %s73
    %p82 = scmp.eq.s32.totalorder %s20, 0
    %p83 = por %p81, %p82
    %p84 = scmp.ne.s32.totalorder %s72, %s73
    %p85 = scmp.eq.s32.totalorder %s21, 7
    %p86 = por %p84, %p85
    %p88 = scmp.ne.s32.totalorder %s73, %s87
    %p89 = scmp.eq.s32.totalorder %s21, 0
    %p90 = por %p88, %p89
    %s92 = sadd.s32 %s91, 1
    %p95 = scmp.eq.s32.totalorder %s15, 7
    %p96 = scmp.ne.s32.totalorder %s91, %s93
    %p97 = scmp.eq.s32.totalorder %s15, 0
    %p98 = por %p96, %p97
    %p99 = scmp.ne.s32.totalorder %s91, %s93
    %p100 = scmp.eq.s32.totalorder %s20, 7
    %p101 = por %p99, %p100
    %p102 = scmp.ne.s32.totalorder %s93, %s94
    %p103 = scmp.eq.s32.totalorder %s20, 0
    %p104 = por %p102, %p103
    %p105 = scmp.ne.s32.totalorder %s93, %s94
    %p106 = scmp.eq.s32.totalorder %s21, 7
    %p107 = por %p105, %p106
    %p109 = scmp.ne.s32.totalorder %s94, %s108
    %p110 = scmp.eq.s32.totalorder %s21, 0
    %p111 = por %p109, %p110
    %s113 = sadd.s32 %s112, 1
    %p116 = scmp.eq.s32.totalorder %s15, 7
    %p117 = scmp.ne.s32.totalorder %s112, %s114
    %p118 = scmp.eq.s32.totalorder %s15, 0
    %p119 = por %p117, %p118
    %p120 = scmp.ne.s32.totalorder %s112, %s114
    %p121 = scmp.eq.s32.totalorder %s20, 7
    %p122 = por %p120, %p121
    %p123 = scmp.ne.s32.totalorder %s114, %s115
    %p124 = scmp.eq.s32.totalorder %s20, 0
    %p125 = por %p123, %p124
    %p126 = scmp.ne.s32.totalorder %s114, %s115
    %p127 = scmp.eq.s32.totalorder %s21, 7
    %p128 = por %p126, %p127
    %p130 = scmp.ne.s32.totalorder %s115, %s129
    %p131 = scmp.eq.s32.totalorder %s21, 0
    %p132 = por %p130, %p131
    %s134 = sadd.s32 %s133, 1
    %p137 = scmp.eq.s32.totalorder %s15, 7
    %p138 = scmp.ne.s32.totalorder %s133, %s135
    %p139 = scmp.eq.s32.totalorder %s15, 0
    %p140 = por %p138, %p139
    %p141 = scmp.ne.s32.totalorder %s133, %s135
    %p142 = scmp.eq.s32.totalorder %s20, 7
    %p143 = por %p141, %p142
    %p144 = scmp.ne.s32.totalorder %s135, %s136
    %p145 = scmp.eq.s32.totalorder %s20, 0
    %p146 = por %p144, %p145
    %p147 = scmp.ne.s32.totalorder %s135, %s136
    %p148 = scmp.eq.s32.totalorder %s21, 7
    %p149 = por %p147, %p148
    %p151 = scmp.ne.s32.totalorder %s136, %s150
    %p152 = scmp.eq.s32.totalorder %s21, 0
    %p153 = por %p151, %p152
    %s155 = sadd.s32 %s154, 1
    %p158 = scmp.eq.s32.totalorder %s15, 7
    %p159 = scmp.ne.s32.totalorder %s154, %s156
    %p160 = scmp.eq.s32.totalorder %s15, 0
    %p161 = por %p159, %p160
    %p162 = scmp.ne.s32.totalorder %s154, %s156
    %p163 = scmp.eq.s32.totalorder %s20, 7
    %p164 = por %p162, %p163
    %p165 = scmp.ne.s32.totalorder %s156, %s157
    %p166 = scmp.eq.s32.totalorder %s20, 0
    %p167 = por %p165, %p166
    %p168 = scmp.ne.s32.totalorder %s156, %s157
    %p169 = scmp.eq.s32.totalorder %s21, 7
    %p170 = por %p168, %p169
    %p172 = scmp.ne.s32.totalorder %s157, %s171
    %p173 = scmp.eq.s32.totalorder %s21, 0
    %p174 = por %p172, %p173
    %s176 = sadd.s32 %s175, 1
    %p179 = scmp.eq.s32.totalorder %s15, 7
    %p180 = scmp.ne.s32.totalorder %s175, %s177
    %p181 = scmp.eq.s32.totalorder %s15, 0
    %p182 = por %p180, %p181
    %p183 = scmp.ne.s32.totalorder %s175, %s177
    %p184 = scmp.eq.s32.totalorder %s20, 7
    %p185 = por %p183, %p184
    %p186 = scmp.ne.s32.totalorder %s177, %s178
    %p187 = scmp.eq.s32.totalorder %s20, 0
    %p188 = por %p186, %p187
    %p189 = scmp.ne.s32.totalorder %s177, %s178
    %p190 = scmp.eq.s32.totalorder %s21, 7
    %p191 = por %p189, %p190
    %p193 = scmp.ne.s32.totalorder %s178, %s192
    %p194 = scmp.eq.s32.totalorder %s21, 0
    %p195 = por %p193, %p194
    %s197 = sadd.s32 %s196, 1
    %p200 = scmp.eq.s32.totalorder %s15, 7
    %p201 = scmp.ne.s32.totalorder %s196, %s198
    %p202 = scmp.eq.s32.totalorder %s15, 0
    %p203 = por %p201, %p202
    %p204 = scmp.ne.s32.totalorder %s196, %s198
    %p205 = scmp.eq.s32.totalorder %s20, 7
    %p206 = por %p204, %p205
    %p207 = scmp.ne.s32.totalorder %s198, %s199
    %p208 = scmp.eq.s32.totalorder %s20, 0
    %p209 = por %p207, %p208
    %p210 = scmp.ne.s32.totalorder %s198, %s199
    %p211 = scmp.eq.s32.totalorder %s21, 7
    %p212 = por %p210, %p211
    %p214 = scmp.ne.s32.totalorder %s199, %s213
    %p215 = scmp.eq.s32.totalorder %s21, 0
    %p216 = por %p214, %p215
    %s217 = ssub.s32 %s15, %s22
    %p218 = scmp.eq.s32.totalorder %s217, 0
    %s220 = sadd.s32 %s219, 1
    %s221 = scalar_select %p218, %s219, %s220
    %p224 = pneg %p218
    %p225 = scmp.eq.s32.totalorder %s15, 7
    %p226 = por %p224, %p225
    %p227 = scmp.ne.s32.totalorder %s219, %s222
    %p228 = scmp.eq.s32.totalorder %s15, 0
    %p229 = por %p227, %p228
    %p230 = scmp.ne.s32.totalorder %s219, %s222
    %p231 = scmp.eq.s32.totalorder %s20, 7
    %p232 = por %p230, %p231
    %p233 = scmp.ne.s32.totalorder %s222, %s223
    %p234 = scmp.eq.s32.totalorder %s20, 0
    %p235 = por %p233, %p234
    %p236 = scmp.ne.s32.totalorder %s222, %s223
    %p237 = scmp.eq.s32.totalorder %s21, 7
    %p238 = por %p236, %p237
    %p240 = scmp.ne.s32.totalorder %s223, %s239
    %p241 = scmp.eq.s32.totalorder %s21, 0
    %p242 = por %p240, %p241
    %p243 = scmp.le.s32.totalorder 1, %s15
    %p244 = scmp.lt.s32.totalorder %s15, 9
    %p245 = pnand %p243, %p244
    %p246 = pneg %p245
    // Predicated region
    $region9: #{tpu_custom_call.1} parent=5 // pred_check
      _
    $region10: #{tpu_custom_call.1} parent=5 // pred_check_branch
      %248 = sbr.rel (%p245) target = $region12
    $region11: #{tpu_custom_call.1} parent=5 // pred_region
      %s249 = ssub.s32 %s15, 1
      // Predicated region
      $region13: #{tpu_custom_call.1} parent=11 // pred_check
        %p250 = pneg %p62
      $region14: #{tpu_custom_call.1} parent=11 // pred_check_branch
        %252 = sbr.rel (%p250) target = $region16
      $region15: #{tpu_custom_call.1} parent=11 // pred_region
        _
      $region16: #{tpu_custom_call.1} parent=11 // pred_fallthru
        _
      // Predicated region
      $region17: #{tpu_custom_call.1} parent=11 // pred_check
        %p253 = pneg %p83
      $region18: #{tpu_custom_call.1} parent=11 // pred_check_branch
        %255 = sbr.rel (%p253) target = $region20
      $region19: #{tpu_custom_call.1} parent=11 // pred_region
        _
      $region20: #{tpu_custom_call.1} parent=11 // pred_fallthru
        _
      // Predicated region
      $region21: #{tpu_custom_call.1} parent=11 // pred_check
        %p256 = pneg %p104
      $region22: #{tpu_custom_call.1} parent=11 // pred_check_branch
        %258 = sbr.rel (%p256) target = $region24
      $region23: #{tpu_custom_call.1} parent=11 // pred_region
        _
      $region24: #{tpu_custom_call.1} parent=11 // pred_fallthru
        _
      // Predicated region
      $region25: #{tpu_custom_call.1} parent=11 // pred_check
        %p259 = pneg %p125
      $region26: #{tpu_custom_call.1} parent=11 // pred_check_branch
        %261 = sbr.rel (%p259) target = $region28
      $region27: #{tpu_custom_call.1} parent=11 // pred_region
        _
      $region28: #{tpu_custom_call.1} parent=11 // pred_fallthru
        _
      // Predicated region
      $region29: #{tpu_custom_call.1} parent=11 // pred_check
        %p262 = pneg %p146
      $region30: #{tpu_custom_call.1} parent=11 // pred_check_branch
        %264 = sbr.rel (%p262) target = $region32
      $region31: #{tpu_custom_call.1} parent=11 // pred_region
        _
      $region32: #{tpu_custom_call.1} parent=11 // pred_fallthru
        _
      // Predicated region
      $region33: #{tpu_custom_call.1} parent=11 // pred_check
        %p265 = pneg %p167
      $region34: #{tpu_custom_call.1} parent=11 // pred_check_branch
        %267 = sbr.rel (%p265) target = $region36
      $region35: #{tpu_custom_call.1} parent=11 // pred_region
        _
      $region36: #{tpu_custom_call.1} parent=11 // pred_fallthru
        _
      // Predicated region
      $region37: #{tpu_custom_call.1} parent=11 // pred_check
        %p268 = pneg %p188
      $region38: #{tpu_custom_call.1} parent=11 // pred_check_branch
        %270 = sbr.rel (%p268) target = $region40
      $region39: #{tpu_custom_call.1} parent=11 // pred_region
        _
      $region40: #{tpu_custom_call.1} parent=11 // pred_fallthru
        _
      // Predicated region
      $region41: #{tpu_custom_call.1} parent=11 // pred_check
        %p271 = pneg %p209
      $region42: #{tpu_custom_call.1} parent=11 // pred_check_branch
        %273 = sbr.rel (%p271) target = $region44
      $region43: #{tpu_custom_call.1} parent=11 // pred_region
        _
      $region44: #{tpu_custom_call.1} parent=11 // pred_fallthru
        _
    $region12: #{tpu_custom_call.1} parent=5 // pred_fallthru
      _
    %p274 = scmp.lt.s32.totalorder %s15, 8
    // Predicated region
    $region45: #{tpu_custom_call.1} parent=5 // pred_check
      %p275 = pneg %p274
    $region46: #{tpu_custom_call.1} parent=5 // pred_check_branch
      %277 = sbr.rel (%p275) target = $region48
    $region47: #{tpu_custom_call.1} parent=5 // pred_region
      // Predicated region
      $region49: #{tpu_custom_call.1} parent=47 // pred_check
        %p278 = pneg %p35
      $region50: #{tpu_custom_call.1} parent=47 // pred_check_branch
        %280 = sbr.rel (%p278) target = $region52
      $region51: #{tpu_custom_call.1} parent=47 // pred_region
        %s281 = smul.u32 32, %s15
        %p282 = scmp.lt.s32.totalorder %s281, 255
        %s283 = scalar_select %p282, %s281, 255
        %s284 = smul.addr %s283, 8
        %s285 = scalar_lea.vmem %s0, %s284
        %s286 = smul.u32 32, %s15
      $region52: #{tpu_custom_call.1} parent=47 // pred_fallthru
        _
    $region48: #{tpu_custom_call.1} parent=5 // pred_fallthru
      _
    %p287 = scmp.le.s32.totalorder 1, %s15
    %p288 = scmp.lt.s32.totalorder %s15, 9
    %p289 = pnand %p287, %p288
    %p290 = pneg %p289
    // Predicated region
    $region53: #{tpu_custom_call.1} parent=5 // pred_check
      _
    $region54: #{tpu_custom_call.1} parent=5 // pred_check_branch
      %292 = sbr.rel (%p289) target = $region56
    $region55: #{tpu_custom_call.1} parent=5 // pred_region
      %s293 = ssub.s32 %s15, 1
      %s294 = smul.u32 32, %s20
      %p295 = scmp.lt.s32.totalorder %s294, 255
      %s296 = scalar_select %p295, %s294, 255
      %s297 = smul.addr %s296, 8
      %s298 = scalar_lea.vmem %s0, %s297
      %p299 = pneg %p41
      %p300 = pneg %p38
      %p301 = pneg %p62
      %p302 = pneg %p59
      %p303 = pneg %p83
      %p304 = pneg %p80
      %p305 = pneg %p104
      %p306 = pneg %p101
      %p307 = pneg %p125
      %p308 = pneg %p122
      %p309 = pneg %p146
      %p310 = pneg %p143
      %p311 = pneg %p167
      %p312 = pneg %p164
      %p313 = pneg %p188
      %p314 = pneg %p185
      %p315 = pneg %p209
      %p316 = pneg %p206
      %p317 = pneg %p235
      %p318 = pneg %p232
      %s319 = smul.u32 32, %s20
      %p320 = scmp.lt.s32.totalorder %s319, 255
      %s321 = scalar_select %p320, %s319, 255
      %s322 = smul.addr %s321, 8
      %s323 = scalar_lea.vmem %s9, %s322
      %s324 = smul.u32 32, %s20
      %p325 = scmp.lt.s32.totalorder %s324, 255
      %s326 = scalar_select %p325, %s324, 255
      %s327 = smul.addr %s326, 8
      %s328 = scalar_lea.vmem %s0, %s327
      %s329 = smul.u32 32, %s20
      %s330 = smul.u32 32, %s20
      %p331 = scmp.lt.s32.totalorder %s330, 255
      %s332 = scalar_select %p331, %s330, 255
      %s333 = smul.addr %s332, 8
      %s334 = scalar_lea.vmem %s9, %s333
      %s335 = smul.u32 32, %s20
      %v337 = vld [vmem:[%s328] sm:$0xff]
      %v338 = vld [vmem:[%s328 + $0x8] sm:$0xff]
      %v339 = vld [vmem:[%s328 + $0x10] sm:$0xff]
      %v340 = vld [vmem:[%s328 + $0x18] sm:$0xff]
      %v341 = vld [vmem:[%s328 + $0x20] sm:$0xff]
      %v342 = vld [vmem:[%s328 + $0x28] sm:$0xff]
      %v343 = vld [vmem:[%s328 + $0x30] sm:$0xff]
      %v344 = vld [vmem:[%s328 + $0x38] sm:$0xff]
      %v345 = vld [vmem:[%s328 + $0x40] sm:$0xff]
      %v346 = vld [vmem:[%s328 + $0x48] sm:$0xff]
      %v347 = vld [vmem:[%s328 + $0x50] sm:$0xff]
      %v348 = vld [vmem:[%s328 + $0x58] sm:$0xff]
      %v349 = vld [vmem:[%s328 + $0x60] sm:$0xff]
      %v350 = vld [vmem:[%s328 + $0x68] sm:$0xff]
      %v351 = vld [vmem:[%s328 + $0x70] sm:$0xff]
      %v352 = vld [vmem:[%s328 + $0x78] sm:$0xff]
      %v353 = vld [vmem:[%s328 + $0x80] sm:$0xff]
      %v354 = vld [vmem:[%s328 + $0x88] sm:$0xff]
      %v355 = vld [vmem:[%s328 + $0x90] sm:$0xff]
      %v356 = vld [vmem:[%s328 + $0x98] sm:$0xff]
      %v357 = vld [vmem:[%s328 + $0xa0] sm:$0xff]
      %v358 = vld [vmem:[%s328 + $0xa8] sm:$0xff]
      %v359 = vld [vmem:[%s328 + $0xb0] sm:$0xff]
      %v360 = vld [vmem:[%s328 + $0xb8] sm:$0xff]
      %v361 = vld [vmem:[%s328 + $0xc0] sm:$0xff]
      %v362 = vld [vmem:[%s328 + $0xc8] sm:$0xff]
      %v363 = vld [vmem:[%s328 + $0xd0] sm:$0xff]
      %v364 = vld [vmem:[%s328 + $0xd8] sm:$0xff]
      %v365 = vld [vmem:[%s328 + $0xe0] sm:$0xff]
      %v366 = vld [vmem:[%s328 + $0xe8] sm:$0xff]
      %v367 = vld [vmem:[%s328 + $0xf0] sm:$0xff]
      %v368 = vld [vmem:[%s328 + $0xf8] sm:$0xff]
      %v369 = vpack.c.bf16 %v338, %v337
      %v370 = vpack.c.bf16 %v340, %v339
      %v371 = vpack.c.bf16 %v342, %v341
      %v372 = vpack.c.bf16 %v344, %v343
      %v373 = vpack.c.bf16 %v346, %v345
      %v374 = vpack.c.bf16 %v348, %v347
      %v375 = vpack.c.bf16 %v350, %v349
      %v376 = vpack.c.bf16 %v352, %v351
      %v377 = vpack.c.bf16 %v354, %v353
      %v378 = vpack.c.bf16 %v356, %v355
      %v379 = vpack.c.bf16 %v358, %v357
      %v380 = vpack.c.bf16 %v360, %v359
      %v381 = vpack.c.bf16 %v362, %v361
      %v382 = vpack.c.bf16 %v364, %v363
      %v383 = vpack.c.bf16 %v366, %v365
      %v384 = vpack.c.bf16 %v368, %v367
      %v385 = vld [vmem:[%s1] sm:$0xf]
      %v386 = vld [vmem:[%s1 + $0x4] sm:$0xf]
      %v387 = vld [vmem:[%s2] sm:$0x1]
      %v389 = vlaneseq
      %v390 = vshrl.u32 %v389, 7
      %v391 = vsub.s32 0, %v390
      %v392 = vrot.slane %v387, %v391
      %v396 = vunpack.c.l.b16 %v385
      %v397 = vunpack.c.l.b16 %v386
      %v398 = vpack.c.b16 %v397, %v396
      %vm400 = vcmask 130048
      %v402 = vsel %vm400, %v369, 0
      %v405 = vsel %vm400, %v370, 0
      %v408 = vsel %vm400, %v371, 0
      %v411 = vsel %vm400, %v372, 0
      %v414 = vsel %vm400, %v373, 0
      %v417 = vsel %vm400, %v374, 0
      %v420 = vsel %vm400, %v375, 0
      %v423 = vsel %vm400, %v376, 0
      %v426 = vsel %vm400, %v377, 0
      %v429 = vsel %vm400, %v378, 0
      %v432 = vsel %vm400, %v379, 0
      %v435 = vsel %vm400, %v380, 0
      %v438 = vsel %vm400, %v381, 0
      %v441 = vsel %vm400, %v382, 0
      %v444 = vsel %vm400, %v383, 0
      %v447 = vsel %vm400, %v384, 0
      %449 = vmatprep.subr.bf16.mxu0 0
      %450 = vmatpush1.bf16.msra.mxu0 %v398
      %451 = vmatprep.subr.bf16.mxu0 0
      %452 = vmatpush1.bf16.msra.mxu0 0
      %453 = vmatprep.subr.bf16.mxu0 0
      %454 = vmatpush1.bf16.msra.mxu0 0
      %455 = vmatprep.subr.bf16.mxu0 0
      %456 = vmatpush1.bf16.msra.mxu0 0
      %457 = vmatprep.subr.bf16.mxu0 0
      %458 = vmatpush1.bf16.msra.mxu0 0
      %459 = vmatprep.subr.bf16.mxu0 0
      %460 = vmatpush1.bf16.msra.mxu0 0
      %461 = vmatprep.subr.bf16.mxu0 0
      %462 = vmatpush1.bf16.msra.mxu0 0
      %463 = vmatprep.subr.bf16.mxu0 0
      %464 = vmatpush1.bf16.msra.mxu0 0
      %465 = vmatprep.subr.bf16.mxu0 0
      %466 = vmatpush1.bf16.msra.mxu0 0
      %467 = vmatprep.subr.bf16.mxu0 0
      %468 = vmatpush1.bf16.msra.mxu0 0
      %469 = vmatprep.subr.bf16.mxu0 0
      %470 = vmatpush1.bf16.msra.mxu0 0
      %471 = vmatprep.subr.bf16.mxu0 0
      %472 = vmatpush1.bf16.msra.mxu0 0
      %473 = vmatprep.subr.bf16.mxu0 0
      %474 = vmatpush1.bf16.msra.mxu0 0
      %475 = vmatprep.subr.bf16.mxu0 0
      %476 = vmatpush1.bf16.msra.mxu0 0
      %477 = vmatprep.subr.bf16.mxu0 0
      %478 = vmatpush1.bf16.msra.mxu0 0
      %479 = vmatprep.subr.bf16.mxu0 0
      %480 = vmatpush1.bf16.msra.mxu0 0
      %481 = vmatprep.mubr.bf16.mxu0 0
      %482 = vmatmul.mubr.bf16.gmra.mrb[0].mxu0 %v402
      %v483 = vpop.f32.mrb[0].mxu0
      %v484 = vadd.f32 %v392, %v483
      %v485 = vpop.f32.mrb[0].mxu0
      %v486 = vpop.f32.mrb[0].mxu0
      %v487 = vadd.f32 %v392, %v486
      %v488 = vpop.f32.mrb[0].mxu0
      %489 = vmatprep.mubr.bf16.mxu0 0
      %490 = vmatmul.mubr.bf16.gmra.mrb[0].mxu0 %v405
      %v491 = vpop.f32.mrb[0].mxu0
      %v492 = vadd.f32 %v392, %v491
      %v493 = vpop.f32.mrb[0].mxu0
      %v494 = vpop.f32.mrb[0].mxu0
      %v495 = vadd.f32 %v392, %v494
      %v496 = vpop.f32.mrb[0].mxu0
      %497 = vmatprep.mubr.bf16.mxu0 0
      %498 = vmatmul.mubr.bf16.gmra.mrb[0].mxu0 %v408
      %v499 = vpop.f32.mrb[0].mxu0
      %v500 = vadd.f32 %v392, %v499
      %v501 = vpop.f32.mrb[0].mxu0
      %v502 = vpop.f32.mrb[0].mxu0
      %v503 = vadd.f32 %v392, %v502
      %v504 = vpop.f32.mrb[0].mxu0
      %505 = vmatprep.mubr.bf16.mxu0 0
      %506 = vmatmul.mubr.bf16.gmra.mrb[0].mxu0 %v411
      %v507 = vpop.f32.mrb[0].mxu0
      %v508 = vadd.f32 %v392, %v507
      %v509 = vpop.f32.mrb[0].mxu0
      %v510 = vpop.f32.mrb[0].mxu0
      %v511 = vadd.f32 %v392, %v510
      %v512 = vpop.f32.mrb[0].mxu0
      %513 = vmatprep.mubr.bf16.mxu0 0
      %514 = vmatmul.mubr.bf16.gmra.mrb[0].mxu0 %v414
      %v515 = vpop.f32.mrb[0].mxu0
      %v516 = vadd.f32 %v392, %v515
      %v517 = vpop.f32.mrb[0].mxu0
      %v518 = vpop.f32.mrb[0].mxu0
      %v519 = vadd.f32 %v392, %v518
      %v520 = vpop.f32.mrb[0].mxu0
      %521 = vmatprep.mubr.bf16.mxu0 0
      %522 = vmatmul.mubr.bf16.gmra.mrb[0].mxu0 %v417
      %v523 = vpop.f32.mrb[0].mxu0
      %v524 = vadd.f32 %v392, %v523
      %v525 = vpop.f32.mrb[0].mxu0
      %v526 = vpop.f32.mrb[0].mxu0
      %v527 = vadd.f32 %v392, %v526
      %v528 = vpop.f32.mrb[0].mxu0
      %529 = vmatprep.mubr.bf16.mxu0 0
      %530 = vmatmul.mubr.bf16.gmra.mrb[0].mxu0 %v420
      %v531 = vpop.f32.mrb[0].mxu0
      %v532 = vadd.f32 %v392, %v531
      %v533 = vpop.f32.mrb[0].mxu0
      %v534 = vpop.f32.mrb[0].mxu0
      %v535 = vadd.f32 %v392, %v534
      %v536 = vpop.f32.mrb[0].mxu0
      %537 = vmatprep.mubr.bf16.mxu0 0
      %538 = vmatmul.mubr.bf16.gmra.mrb[0].mxu0 %v423
      %v539 = vpop.f32.mrb[0].mxu0
      %v540 = vadd.f32 %v392, %v539
      %v541 = vpop.f32.mrb[0].mxu0
      %v542 = vpop.f32.mrb[0].mxu0
      %v543 = vadd.f32 %v392, %v542
      %v544 = vpop.f32.mrb[0].mxu0
      %545 = vmatprep.mubr.bf16.mxu0 0
      %546 = vmatmul.mubr.bf16.gmra.mrb[0].mxu0 %v426
      %v547 = vpop.f32.mrb[0].mxu0
      %v548 = vadd.f32 %v392, %v547
      %v549 = vpop.f32.mrb[0].mxu0
      %v550 = vpop.f32.mrb[0].mxu0
      %v551 = vadd.f32 %v392, %v550
      %v552 = vpop.f32.mrb[0].mxu0
      %553 = vmatprep.mubr.bf16.mxu0 0
      %554 = vmatmul.mubr.bf16.gmra.mrb[0].mxu0 %v429
      %v555 = vpop.f32.mrb[0].mxu0
      %v556 = vadd.f32 %v392, %v555
      %v557 = vpop.f32.mrb[0].mxu0
      %v558 = vpop.f32.mrb[0].mxu0
      %v559 = vadd.f32 %v392, %v558
      %v560 = vpop.f32.mrb[0].mxu0
      %561 = vmatprep.mubr.bf16.mxu0 0
      %562 = vmatmul.mubr.bf16.gmra.mrb[0].mxu0 %v432
      %v563 = vpop.f32.mrb[0].mxu0
      %v564 = vadd.f32 %v392, %v563
      %v565 = vpop.f32.mrb[0].mxu0
      %v566 = vpop.f32.mrb[0].mxu0
      %v567 = vadd.f32 %v392, %v566
      %v568 = vpop.f32.mrb[0].mxu0
      %569 = vmatprep.mubr.bf16.mxu0 0
      %570 = vmatmul.mubr.bf16.gmra.mrb[0].mxu0 %v435
      %v571 = vpop.f32.mrb[0].mxu0
      %v572 = vadd.f32 %v392, %v571
      %v573 = vpop.f32.mrb[0].mxu0
      %v574 = vpop.f32.mrb[0].mxu0
      %v575 = vadd.f32 %v392, %v574
      %v576 = vpop.f32.mrb[0].mxu0
      %577 = vmatprep.mubr.bf16.mxu0 0
      %578 = vmatmul.mubr.bf16.gmra.mrb[0].mxu0 %v438
      %v579 = vpop.f32.mrb[0].mxu0
      %v580 = vadd.f32 %v392, %v579
      %v581 = vpop.f32.mrb[0].mxu0
      %v582 = vpop.f32.mrb[0].mxu0
      %v583 = vadd.f32 %v392, %v582
      %v584 = vpop.f32.mrb[0].mxu0
      %585 = vmatprep.mubr.bf16.mxu0 0
      %586 = vmatmul.mubr.bf16.gmra.mrb[0].mxu0 %v441
      %v587 = vpop.f32.mrb[0].mxu0
      %v588 = vadd.f32 %v392, %v587
      %v589 = vpop.f32.mrb[0].mxu0
      %v590 = vpop.f32.mrb[0].mxu0
      %v591 = vadd.f32 %v392, %v590
      %v592 = vpop.f32.mrb[0].mxu0
      %593 = vmatprep.mubr.bf16.mxu0 0
      %594 = vmatmul.mubr.bf16.gmra.mrb[0].mxu0 %v444
      %v595 = vpop.f32.mrb[0].mxu0
      %v596 = vadd.f32 %v392, %v595
      %v597 = vpop.f32.mrb[0].mxu0
      %v598 = vpop.f32.mrb[0].mxu0
      %v599 = vadd.f32 %v392, %v598
      %v600 = vpop.f32.mrb[0].mxu0
      %601 = vmatprep.mubr.bf16.mxu0 0
      %602 = vmatmul.mubr.bf16.gmra.mrb[0].mxu0 %v447
      %v603 = vpop.f32.mrb[0].mxu0
      %v604 = vadd.f32 %v392, %v603
      %v605 = vpop.f32.mrb[0].mxu0
      %v606 = vpop.f32.mrb[0].mxu0
      %v607 = vadd.f32 %v392, %v606
      %v608 = vpop.f32.mrb[0].mxu0
      %609 = vdwg.mxu0
      %v610 = vmax.f32 %v484, 0.0
      %v611 = vmax.f32 %v487, 0.0
      %v612 = vmax.f32 %v492, 0.0
      %v613 = vmax.f32 %v495, 0.0
      %v614 = vmax.f32 %v500, 0.0
      %v615 = vmax.f32 %v503, 0.0
      %v616 = vmax.f32 %v508, 0.0
      %v617 = vmax.f32 %v511, 0.0
      %v618 = vmax.f32 %v516, 0.0
      %v619 = vmax.f32 %v519, 0.0
      %v620 = vmax.f32 %v524, 0.0
      %v621 = vmax.f32 %v527, 0.0
      %v622 = vmax.f32 %v532, 0.0
      %v623 = vmax.f32 %v535, 0.0
      %v624 = vmax.f32 %v540, 0.0
      %v625 = vmax.f32 %v543, 0.0
      %v626 = vmax.f32 %v548, 0.0
      %v627 = vmax.f32 %v551, 0.0
      %v628 = vmax.f32 %v556, 0.0
      %v629 = vmax.f32 %v559, 0.0
      %v630 = vmax.f32 %v564, 0.0
      %v631 = vmax.f32 %v567, 0.0
      %v632 = vmax.f32 %v572, 0.0
      %v633 = vmax.f32 %v575, 0.0
      %v634 = vmax.f32 %v580, 0.0
      %v635 = vmax.f32 %v583, 0.0
      %v636 = vmax.f32 %v588, 0.0
      %v637 = vmax.f32 %v591, 0.0
      %v638 = vmax.f32 %v596, 0.0
      %v639 = vmax.f32 %v599, 0.0
      %v640 = vmax.f32 %v604, 0.0
      %v641 = vmax.f32 %v607, 0.0
      %v642 = vpack.c.bf16 %v611, %v610
      %v643 = vpack.c.bf16 %v613, %v612
      %v644 = vpack.c.bf16 %v615, %v614
      %v645 = vpack.c.bf16 %v617, %v616
      %v646 = vpack.c.bf16 %v619, %v618
      %v647 = vpack.c.bf16 %v621, %v620
      %v648 = vpack.c.bf16 %v623, %v622
      %v649 = vpack.c.bf16 %v625, %v624
      %v650 = vpack.c.bf16 %v627, %v626
      %v651 = vpack.c.bf16 %v629, %v628
      %v652 = vpack.c.bf16 %v631, %v630
      %v653 = vpack.c.bf16 %v633, %v632
      %v654 = vpack.c.bf16 %v635, %v634
      %v655 = vpack.c.bf16 %v637, %v636
      %v656 = vpack.c.bf16 %v639, %v638
      %v657 = vpack.c.bf16 %v641, %v640
      %v658 = vld [vmem:[%s3] sm:$0xf]
      %v659 = vld [vmem:[%s3 + $0x4] sm:$0xf]
      %v660 = vld [vmem:[%s3 + $0x8] sm:$0xf]
      %v661 = vld [vmem:[%s3 + $0xc] sm:$0xf]
      %v662 = vld [vmem:[%s3 + $0x10] sm:$0xf]
      %v663 = vld [vmem:[%s3 + $0x14] sm:$0xf]
      %v664 = vld [vmem:[%s3 + $0x18] sm:$0xf]
      %v665 = vld [vmem:[%s3 + $0x1c] sm:$0xf]
      %v666 = vld [vmem:[%s3 + $0x20] sm:$0xf]
      %v667 = vld [vmem:[%s3 + $0x24] sm:$0xf]
      %v668 = vld [vmem:[%s3 + $0x28] sm:$0xf]
      %v669 = vld [vmem:[%s3 + $0x2c] sm:$0xf]
      %v670 = vld [vmem:[%s3 + $0x30] sm:$0xf]
      %v671 = vld [vmem:[%s3 + $0x34] sm:$0xf]
      %v672 = vld [vmem:[%s3 + $0x38] sm:$0xf]
      %v673 = vld [vmem:[%s3 + $0x3c] sm:$0xf]
      %v674 = vld [vmem:[%s4] sm:$0x1]
      %v676 = vlaneseq
      %v677 = vshrl.u32 %v676, 7
      %v678 = vsub.s32 0, %v677
      %v679 = vrot.slane %v674, %v678
      %v697 = vunpack.c.l.b16 %v658
      %v698 = vunpack.c.l.b16 %v659
      %v699 = vunpack.c.l.b16 %v660
      %v700 = vunpack.c.l.b16 %v661
      %v701 = vunpack.c.l.b16 %v662
      %v702 = vunpack.c.l.b16 %v663
      %v703 = vunpack.c.l.b16 %v664
      %v704 = vunpack.c.l.b16 %v665
      %v705 = vunpack.c.l.b16 %v666
      %v706 = vunpack.c.l.b16 %v667
      %v707 = vunpack.c.l.b16 %v668
      %v708 = vunpack.c.l.b16 %v669
      %v709 = vunpack.c.l.b16 %v670
      %v710 = vunpack.c.l.b16 %v671
      %v711 = vunpack.c.l.b16 %v672
      %v712 = vunpack.c.l.b16 %v673
      %v713 = vpack.c.b16 %v698, %v697
      %v714 = vpack.c.b16 %v700, %v699
      %v715 = vpack.c.b16 %v702, %v701
      %v716 = vpack.c.b16 %v704, %v703
      %v717 = vpack.c.b16 %v706, %v705
      %v718 = vpack.c.b16 %v708, %v707
      %v719 = vpack.c.b16 %v710, %v709
      %v720 = vpack.c.b16 %v712, %v711
      %729 = vmatprep.subr.bf16.mxu0 0
      %730 = vmatpush1.bf16.msra.mxu0 %v713
      %731 = vmatprep.subr.bf16.mxu0 0
      %732 = vmatpush1.bf16.msra.mxu0 %v714
      %733 = vmatprep.subr.bf16.mxu0 0
      %734 = vmatpush1.bf16.msra.mxu0 %v715
      %735 = vmatprep.subr.bf16.mxu0 0
      %736 = vmatpush1.bf16.msra.mxu0 %v716
      %737 = vmatprep.subr.bf16.mxu0 0
      %738 = vmatpush1.bf16.msra.mxu0 %v717
      %739 = vmatprep.subr.bf16.mxu0 0
      %740 = vmatpush1.bf16.msra.mxu0 %v718
      %741 = vmatprep.subr.bf16.mxu0 0
      %742 = vmatpush1.bf16.msra.mxu0 %v719
      %743 = vmatprep.subr.bf16.mxu0 0
      %744 = vmatpush1.bf16.msra.mxu0 %v720
      %745 = vmatprep.subr.bf16.mxu0 0
      %746 = vmatpush1.bf16.msra.mxu0 0
      %747 = vmatprep.subr.bf16.mxu0 0
      %748 = vmatpush1.bf16.msra.mxu0 0
      %749 = vmatprep.subr.bf16.mxu0 0
      %750 = vmatpush1.bf16.msra.mxu0 0
      %751 = vmatprep.subr.bf16.mxu0 0
      %752 = vmatpush1.bf16.msra.mxu0 0
      %753 = vmatprep.subr.bf16.mxu0 0
      %754 = vmatpush1.bf16.msra.mxu0 0
      %755 = vmatprep.subr.bf16.mxu0 0
      %756 = vmatpush1.bf16.msra.mxu0 0
      %757 = vmatprep.subr.bf16.mxu0 0
      %758 = vmatpush1.bf16.msra.mxu0 0
      %759 = vmatprep.subr.bf16.mxu0 0
      %760 = vmatpush1.bf16.msra.mxu0 0
      %761 = vmatprep.mubr.bf16.mxu0 0
      %762 = vmatmul.mubr.bf16.gmra.mrb[0].mxu0 %v642
      %v763 = vpop.f32.mrb[0].mxu0
      %v764 = vadd.f32 %v679, %v763
      %v765 = vpop.f32.mrb[0].mxu0
      %v766 = vpop.f32.mrb[0].mxu0
      %v767 = vadd.f32 %v679, %v766
      %v768 = vpop.f32.mrb[0].mxu0
      %769 = vmatprep.mubr.bf16.mxu0 0
      %770 = vmatmul.mubr.bf16.gmra.mrb[0].mxu0 %v643
      %v771 = vpop.f32.mrb[0].mxu0
      %v772 = vadd.f32 %v679, %v771
      %v773 = vpop.f32.mrb[0].mxu0
      %v774 = vpop.f32.mrb[0].mxu0
      %v775 = vadd.f32 %v679, %v774
      %v776 = vpop.f32.mrb[0].mxu0
      %777 = vmatprep.mubr.bf16.mxu0 0
      %778 = vmatmul.mubr.bf16.gmra.mrb[0].mxu0 %v644
      %v779 = vpop.f32.mrb[0].mxu0
      %v780 = vadd.f32 %v679, %v779
      %v781 = vpop.f32.mrb[0].mxu0
      %v782 = vpop.f32.mrb[0].mxu0
      %v783 = vadd.f32 %v679, %v782
      %v784 = vpop.f32.mrb[0].mxu0
      %785 = vmatprep.mubr.bf16.mxu0 0
      %786 = vmatmul.mubr.bf16.gmra.mrb[0].mxu0 %v645
      %v787 = vpop.f32.mrb[0].mxu0
      %v788 = vadd.f32 %v679, %v787
      %v789 = vpop.f32.mrb[0].mxu0
      %v790 = vpop.f32.mrb[0].mxu0
      %v791 = vadd.f32 %v679, %v790
      %v792 = vpop.f32.mrb[0].mxu0
      %793 = vmatprep.mubr.bf16.mxu0 0
      %794 = vmatmul.mubr.bf16.gmra.mrb[0].mxu0 %v646
      %v795 = vpop.f32.mrb[0].mxu0
      %v796 = vadd.f32 %v679, %v795
      %v797 = vpop.f32.mrb[0].mxu0
      %v798 = vpop.f32.mrb[0].mxu0
      %v799 = vadd.f32 %v679, %v798
      %v800 = vpop.f32.mrb[0].mxu0
      %801 = vmatprep.mubr.bf16.mxu0 0
      %802 = vmatmul.mubr.bf16.gmra.mrb[0].mxu0 %v647
      %v803 = vpop.f32.mrb[0].mxu0
      %v804 = vadd.f32 %v679, %v803
      %v805 = vpop.f32.mrb[0].mxu0
      %v806 = vpop.f32.mrb[0].mxu0
      %v807 = vadd.f32 %v679, %v806
      %v808 = vpop.f32.mrb[0].mxu0
      %809 = vmatprep.mubr.bf16.mxu0 0
      %810 = vmatmul.mubr.bf16.gmra.mrb[0].mxu0 %v648
      %v811 = vpop.f32.mrb[0].mxu0
      %v812 = vadd.f32 %v679, %v811
      %v813 = vpop.f32.mrb[0].mxu0
      %v814 = vpop.f32.mrb[0].mxu0
      %v815 = vadd.f32 %v679, %v814
      %v816 = vpop.f32.mrb[0].mxu0
      %817 = vmatprep.mubr.bf16.mxu0 0
      %818 = vmatmul.mubr.bf16.gmra.mrb[0].mxu0 %v649
      %v819 = vpop.f32.mrb[0].mxu0
      %v820 = vadd.f32 %v679, %v819
      %v821 = vpop.f32.mrb[0].mxu0
      %v822 = vpop.f32.mrb[0].mxu0
      %v823 = vadd.f32 %v679, %v822
      %v824 = vpop.f32.mrb[0].mxu0
      %825 = vmatprep.mubr.bf16.mxu0 0
      %826 = vmatmul.mubr.bf16.gmra.mrb[0].mxu0 %v650
      %v827 = vpop.f32.mrb[0].mxu0
      %v828 = vadd.f32 %v679, %v827
      %v829 = vpop.f32.mrb[0].mxu0
      %v830 = vpop.f32.mrb[0].mxu0
      %v831 = vadd.f32 %v679, %v830
      %v832 = vpop.f32.mrb[0].mxu0
      %833 = vmatprep.mubr.bf16.mxu0 0
      %834 = vmatmul.mubr.bf16.gmra.mrb[0].mxu0 %v651
      %v835 = vpop.f32.mrb[0].mxu0
      %v836 = vadd.f32 %v679, %v835
      %v837 = vpop.f32.mrb[0].mxu0
      %v838 = vpop.f32.mrb[0].mxu0
      %v839 = vadd.f32 %v679, %v838
      %v840 = vpop.f32.mrb[0].mxu0
      %841 = vmatprep.mubr.bf16.mxu0 0
      %842 = vmatmul.mubr.bf16.gmra.mrb[0].mxu0 %v652
      %v843 = vpop.f32.mrb[0].mxu0
      %v844 = vadd.f32 %v679, %v843
      %v845 = vpop.f32.mrb[0].mxu0
      %v846 = vpop.f32.mrb[0].mxu0
      %v847 = vadd.f32 %v679, %v846
      %v848 = vpop.f32.mrb[0].mxu0
      %849 = vmatprep.mubr.bf16.mxu0 0
      %850 = vmatmul.mubr.bf16.gmra.mrb[0].mxu0 %v653
      %v851 = vpop.f32.mrb[0].mxu0
      %v852 = vadd.f32 %v679, %v851
      %v853 = vpop.f32.mrb[0].mxu0
      %v854 = vpop.f32.mrb[0].mxu0
      %v855 = vadd.f32 %v679, %v854
      %v856 = vpop.f32.mrb[0].mxu0
      %857 = vmatprep.mubr.bf16.mxu0 0
      %858 = vmatmul.mubr.bf16.gmra.mrb[0].mxu0 %v654
      %v859 = vpop.f32.mrb[0].mxu0
      %v860 = vadd.f32 %v679, %v859
      %v861 = vpop.f32.mrb[0].mxu0
      %v862 = vpop.f32.mrb[0].mxu0
      %v863 = vadd.f32 %v679, %v862
      %v864 = vpop.f32.mrb[0].mxu0
      %865 = vmatprep.mubr.bf16.mxu0 0
      %866 = vmatmul.mubr.bf16.gmra.mrb[0].mxu0 %v655
      %v867 = vpop.f32.mrb[0].mxu0
      %v868 = vadd.f32 %v679, %v867
      %v869 = vpop.f32.mrb[0].mxu0
      %v870 = vpop.f32.mrb[0].mxu0
      %v871 = vadd.f32 %v679, %v870
      %v872 = vpop.f32.mrb[0].mxu0
      %873 = vmatprep.mubr.bf16.mxu0 0
      %874 = vmatmul.mubr.bf16.gmra.mrb[0].mxu0 %v656
      %v875 = vpop.f32.mrb[0].mxu0
      %v876 = vadd.f32 %v679, %v875
      %v877 = vpop.f32.mrb[0].mxu0
      %v878 = vpop.f32.mrb[0].mxu0
      %v879 = vadd.f32 %v679, %v878
      %v880 = vpop.f32.mrb[0].mxu0
      %881 = vmatprep.mubr.bf16.mxu0 0
      %882 = vmatmul.mubr.bf16.gmra.mrb[0].mxu0 %v657
      %v883 = vpop.f32.mrb[0].mxu0
      %v884 = vadd.f32 %v679, %v883
      %v885 = vpop.f32.mrb[0].mxu0
      %v886 = vpop.f32.mrb[0].mxu0
      %v887 = vadd.f32 %v679, %v886
      %v888 = vpop.f32.mrb[0].mxu0
      %889 = vdwg.mxu0
      %v890 = vmax.f32 %v764, 0.0
      %v891 = vmax.f32 %v767, 0.0
      %v892 = vmax.f32 %v772, 0.0
      %v893 = vmax.f32 %v775, 0.0
      %v894 = vmax.f32 %v780, 0.0
      %v895 = vmax.f32 %v783, 0.0
      %v896 = vmax.f32 %v788, 0.0
      %v897 = vmax.f32 %v791, 0.0
      %v898 = vmax.f32 %v796, 0.0
      %v899 = vmax.f32 %v799, 0.0
      %v900 = vmax.f32 %v804, 0.0
      %v901 = vmax.f32 %v807, 0.0
      %v902 = vmax.f32 %v812, 0.0
      %v903 = vmax.f32 %v815, 0.0
      %v904 = vmax.f32 %v820, 0.0
      %v905 = vmax.f32 %v823, 0.0
      %v906 = vmax.f32 %v828, 0.0
      %v907 = vmax.f32 %v831, 0.0
      %v908 = vmax.f32 %v836, 0.0
      %v909 = vmax.f32 %v839, 0.0
      %v910 = vmax.f32 %v844, 0.0
      %v911 = vmax.f32 %v847, 0.0
      %v912 = vmax.f32 %v852, 0.0
      %v913 = vmax.f32 %v855, 0.0
      %v914 = vmax.f32 %v860, 0.0
      %v915 = vmax.f32 %v863, 0.0
      %v916 = vmax.f32 %v868, 0.0
      %v917 = vmax.f32 %v871, 0.0
      %v918 = vmax.f32 %v876, 0.0
      %v919 = vmax.f32 %v879, 0.0
      %v920 = vmax.f32 %v884, 0.0
      %v921 = vmax.f32 %v887, 0.0
      %v922 = vpack.c.bf16 %v891, %v890
      %v923 = vpack.c.bf16 %v893, %v892
      %v924 = vpack.c.bf16 %v895, %v894
      %v925 = vpack.c.bf16 %v897, %v896
      %v926 = vpack.c.bf16 %v899, %v898
      %v927 = vpack.c.bf16 %v901, %v900
      %v928 = vpack.c.bf16 %v903, %v902
      %v929 = vpack.c.bf16 %v905, %v904
      %v930 = vpack.c.bf16 %v907, %v906
      %v931 = vpack.c.bf16 %v909, %v908
      %v932 = vpack.c.bf16 %v911, %v910
      %v933 = vpack.c.bf16 %v913, %v912
      %v934 = vpack.c.bf16 %v915, %v914
      %v935 = vpack.c.bf16 %v917, %v916
      %v936 = vpack.c.bf16 %v919, %v918
      %v937 = vpack.c.bf16 %v921, %v920
      %v938 = vld [vmem:[%s5] sm:$0xf]
      %v939 = vld [vmem:[%s5 + $0x4] sm:$0xf]
      %v940 = vld [vmem:[%s5 + $0x8] sm:$0xf]
      %v941 = vld [vmem:[%s5 + $0xc] sm:$0xf]
      %v942 = vld [vmem:[%s5 + $0x10] sm:$0xf]
      %v943 = vld [vmem:[%s5 + $0x14] sm:$0xf]
      %v944 = vld [vmem:[%s5 + $0x18] sm:$0xf]
      %v945 = vld [vmem:[%s5 + $0x1c] sm:$0xf]
      %v946 = vld [vmem:[%s5 + $0x20] sm:$0xf]
      %v947 = vld [vmem:[%s5 + $0x24] sm:$0xf]
      %v948 = vld [vmem:[%s5 + $0x28] sm:$0xf]
      %v949 = vld [vmem:[%s5 + $0x2c] sm:$0xf]
      %v950 = vld [vmem:[%s5 + $0x30] sm:$0xf]
      %v951 = vld [vmem:[%s5 + $0x34] sm:$0xf]
      %v952 = vld [vmem:[%s5 + $0x38] sm:$0xf]
      %v953 = vld [vmem:[%s5 + $0x3c] sm:$0xf]
      %v954 = vld [vmem:[%s6] sm:$0x1]
      %v956 = vlaneseq
      %v957 = vshrl.u32 %v956, 7
      %v958 = vsub.s32 0, %v957
      %v959 = vrot.slane %v954, %v958
      %v977 = vunpack.c.l.b16 %v938
      %v978 = vunpack.c.l.b16 %v939
      %v979 = vunpack.c.l.b16 %v940
      %v980 = vunpack.c.l.b16 %v941
      %v981 = vunpack.c.l.b16 %v942
      %v982 = vunpack.c.l.b16 %v943
      %v983 = vunpack.c.l.b16 %v944
      %v984 = vunpack.c.l.b16 %v945
      %v985 = vunpack.c.l.b16 %v946
      %v986 = vunpack.c.l.b16 %v947
      %v987 = vunpack.c.l.b16 %v948
      %v988 = vunpack.c.l.b16 %v949
      %v989 = vunpack.c.l.b16 %v950
      %v990 = vunpack.c.l.b16 %v951
      %v991 = vunpack.c.l.b16 %v952
      %v992 = vunpack.c.l.b16 %v953
      %v993 = vpack.c.b16 %v978, %v977
      %v994 = vpack.c.b16 %v980, %v979
      %v995 = vpack.c.b16 %v982, %v981
      %v996 = vpack.c.b16 %v984, %v983
      %v997 = vpack.c.b16 %v986, %v985
      %v998 = vpack.c.b16 %v988, %v987
      %v999 = vpack.c.b16 %v990, %v989
      %v1000 = vpack.c.b16 %v992, %v991
      %1009 = vmatprep.subr.bf16.mxu0 0
      %1010 = vmatpush1.bf16.msra.mxu0 %v993
      %1011 = vmatprep.subr.bf16.mxu0 0
      %1012 = vmatpush1.bf16.msra.mxu0 %v994
      %1013 = vmatprep.subr.bf16.mxu0 0
      %1014 = vmatpush1.bf16.msra.mxu0 %v995
      %1015 = vmatprep.subr.bf16.mxu0 0
      %1016 = vmatpush1.bf16.msra.mxu0 %v996
      %1017 = vmatprep.subr.bf16.mxu0 0
      %1018 = vmatpush1.bf16.msra.mxu0 %v997
      %1019 = vmatprep.subr.bf16.mxu0 0
      %1020 = vmatpush1.bf16.msra.mxu0 %v998
      %1021 = vmatprep.subr.bf16.mxu0 0
      %1022 = vmatpush1.bf16.msra.mxu0 %v999
      %1023 = vmatprep.subr.bf16.mxu0 0
      %1024 = vmatpush1.bf16.msra.mxu0 %v1000
      %1025 = vmatprep.subr.bf16.mxu0 0
      %1026 = vmatpush1.bf16.msra.mxu0 0
      %1027 = vmatprep.subr.bf16.mxu0 0
      %1028 = vmatpush1.bf16.msra.mxu0 0
      %1029 = vmatprep.subr.bf16.mxu0 0
      %1030 = vmatpush1.bf16.msra.mxu0 0
      %1031 = vmatprep.subr.bf16.mxu0 0
      %1032 = vmatpush1.bf16.msra.mxu0 0
      %1033 = vmatprep.subr.bf16.mxu0 0
      %1034 = vmatpush1.bf16.msra.mxu0 0
      %1035 = vmatprep.subr.bf16.mxu0 0
      %1036 = vmatpush1.bf16.msra.mxu0 0
      %1037 = vmatprep.subr.bf16.mxu0 0
      %1038 = vmatpush1.bf16.msra.mxu0 0
      %1039 = vmatprep.subr.bf16.mxu0 0
      %1040 = vmatpush1.bf16.msra.mxu0 0
      %1041 = vmatprep.mubr.bf16.mxu0 0
      %1042 = vmatmul.mubr.bf16.gmra.mrb[0].mxu0 %v922
      %v1043 = vpop.f32.mrb[0].mxu0
      %v1044 = vadd.f32 %v959, %v1043
      %v1045 = vpop.f32.mrb[0].mxu0
      %v1046 = vpop.f32.mrb[0].mxu0
      %v1047 = vadd.f32 %v959, %v1046
      %v1048 = vpop.f32.mrb[0].mxu0
      %1049 = vmatprep.mubr.bf16.mxu0 0
      %1050 = vmatmul.mubr.bf16.gmra.mrb[0].mxu0 %v923
      %v1051 = vpop.f32.mrb[0].mxu0
      %v1052 = vadd.f32 %v959, %v1051
      %v1053 = vpop.f32.mrb[0].mxu0
      %v1054 = vpop.f32.mrb[0].mxu0
      %v1055 = vadd.f32 %v959, %v1054
      %v1056 = vpop.f32.mrb[0].mxu0
      %1057 = vmatprep.mubr.bf16.mxu0 0
      %1058 = vmatmul.mubr.bf16.gmra.mrb[0].mxu0 %v924
      %v1059 = vpop.f32.mrb[0].mxu0
      %v1060 = vadd.f32 %v959, %v1059
      %v1061 = vpop.f32.mrb[0].mxu0
      %v1062 = vpop.f32.mrb[0].mxu0
      %v1063 = vadd.f32 %v959, %v1062
      %v1064 = vpop.f32.mrb[0].mxu0
      %1065 = vmatprep.mubr.bf16.mxu0 0
      %1066 = vmatmul.mubr.bf16.gmra.mrb[0].mxu0 %v925
      %v1067 = vpop.f32.mrb[0].mxu0
      %v1068 = vadd.f32 %v959, %v1067
      %v1069 = vpop.f32.mrb[0].mxu0
      %v1070 = vpop.f32.mrb[0].mxu0
      %v1071 = vadd.f32 %v959, %v1070
      %v1072 = vpop.f32.mrb[0].mxu0
      %1073 = vmatprep.mubr.bf16.mxu0 0
      %1074 = vmatmul.mubr.bf16.gmra.mrb[0].mxu0 %v926
      %v1075 = vpop.f32.mrb[0].mxu0
      %v1076 = vadd.f32 %v959, %v1075
      %v1077 = vpop.f32.mrb[0].mxu0
      %v1078 = vpop.f32.mrb[0].mxu0
      %v1079 = vadd.f32 %v959, %v1078
      %v1080 = vpop.f32.mrb[0].mxu0
      %1081 = vmatprep.mubr.bf16.mxu0 0
      %1082 = vmatmul.mubr.bf16.gmra.mrb[0].mxu0 %v927
      %v1083 = vpop.f32.mrb[0].mxu0
      %v1084 = vadd.f32 %v959, %v1083
      %v1085 = vpop.f32.mrb[0].mxu0
      %v1086 = vpop.f32.mrb[0].mxu0
      %v1087 = vadd.f32 %v959, %v1086
      %v1088 = vpop.f32.mrb[0].mxu0
      %1089 = vmatprep.mubr.bf16.mxu0 0
      %1090 = vmatmul.mubr.bf16.gmra.mrb[0].mxu0 %v928
      %v1091 = vpop.f32.mrb[0].mxu0
      %v1092 = vadd.f32 %v959, %v1091
      %v1093 = vpop.f32.mrb[0].mxu0
      %v1094 = vpop.f32.mrb[0].mxu0
      %v1095 = vadd.f32 %v959, %v1094
      %v1096 = vpop.f32.mrb[0].mxu0
      %1097 = vmatprep.mubr.bf16.mxu0 0
      %1098 = vmatmul.mubr.bf16.gmra.mrb[0].mxu0 %v929
      %v1099 = vpop.f32.mrb[0].mxu0
      %v1100 = vadd.f32 %v959, %v1099
      %v1101 = vpop.f32.mrb[0].mxu0
      %v1102 = vpop.f32.mrb[0].mxu0
      %v1103 = vadd.f32 %v959, %v1102
      %v1104 = vpop.f32.mrb[0].mxu0
      %1105 = vmatprep.mubr.bf16.mxu0 0
      %1106 = vmatmul.mubr.bf16.gmra.mrb[0].mxu0 %v930
      %v1107 = vpop.f32.mrb[0].mxu0
      %v1108 = vadd.f32 %v959, %v1107
      %v1109 = vpop.f32.mrb[0].mxu0
      %v1110 = vpop.f32.mrb[0].mxu0
      %v1111 = vadd.f32 %v959, %v1110
      %v1112 = vpop.f32.mrb[0].mxu0
      %1113 = vmatprep.mubr.bf16.mxu0 0
      %1114 = vmatmul.mubr.bf16.gmra.mrb[0].mxu0 %v931
      %v1115 = vpop.f32.mrb[0].mxu0
      %v1116 = vadd.f32 %v959, %v1115
      %v1117 = vpop.f32.mrb[0].mxu0
      %v1118 = vpop.f32.mrb[0].mxu0
      %v1119 = vadd.f32 %v959, %v1118
      %v1120 = vpop.f32.mrb[0].mxu0
      %1121 = vmatprep.mubr.bf16.mxu0 0
      %1122 = vmatmul.mubr.bf16.gmra.mrb[0].mxu0 %v932
      %v1123 = vpop.f32.mrb[0].mxu0
      %v1124 = vadd.f32 %v959, %v1123
      %v1125 = vpop.f32.mrb[0].mxu0
      %v1126 = vpop.f32.mrb[0].mxu0
      %v1127 = vadd.f32 %v959, %v1126
      %v1128 = vpop.f32.mrb[0].mxu0
      %1129 = vmatprep.mubr.bf16.mxu0 0
      %1130 = vmatmul.mubr.bf16.gmra.mrb[0].mxu0 %v933
      %v1131 = vpop.f32.mrb[0].mxu0
      %v1132 = vadd.f32 %v959, %v1131
      %v1133 = vpop.f32.mrb[0].mxu0
      %v1134 = vpop.f32.mrb[0].mxu0
      %v1135 = vadd.f32 %v959, %v1134
      %v1136 = vpop.f32.mrb[0].mxu0
      %1137 = vmatprep.mubr.bf16.mxu0 0
      %1138 = vmatmul.mubr.bf16.gmra.mrb[0].mxu0 %v934
      %v1139 = vpop.f32.mrb[0].mxu0
      %v1140 = vadd.f32 %v959, %v1139
      %v1141 = vpop.f32.mrb[0].mxu0
      %v1142 = vpop.f32.mrb[0].mxu0
      %v1143 = vadd.f32 %v959, %v1142
      %v1144 = vpop.f32.mrb[0].mxu0
      %1145 = vmatprep.mubr.bf16.mxu0 0
      %1146 = vmatmul.mubr.bf16.gmra.mrb[0].mxu0 %v935
      %v1147 = vpop.f32.mrb[0].mxu0
      %v1148 = vadd.f32 %v959, %v1147
      %v1149 = vpop.f32.mrb[0].mxu0
      %v1150 = vpop.f32.mrb[0].mxu0
      %v1151 = vadd.f32 %v959, %v1150
      %v1152 = vpop.f32.mrb[0].mxu0
      %1153 = vmatprep.mubr.bf16.mxu0 0
      %1154 = vmatmul.mubr.bf16.gmra.mrb[0].mxu0 %v936
      %v1155 = vpop.f32.mrb[0].mxu0
      %v1156 = vadd.f32 %v959, %v1155
      %v1157 = vpop.f32.mrb[0].mxu0
      %v1158 = vpop.f32.mrb[0].mxu0
      %v1159 = vadd.f32 %v959, %v1158
      %v1160 = vpop.f32.mrb[0].mxu0
      %1161 = vmatprep.mubr.bf16.mxu0 0
      %1162 = vmatmul.mubr.bf16.gmra.mrb[0].mxu0 %v937
      %v1163 = vpop.f32.mrb[0].mxu0
      %v1164 = vadd.f32 %v959, %v1163
      %v1165 = vpop.f32.mrb[0].mxu0
      %v1166 = vpop.f32.mrb[0].mxu0
      %v1167 = vadd.f32 %v959, %v1166
      %v1168 = vpop.f32.mrb[0].mxu0
      %1169 = vdwg.mxu0
      %v1170 = vmax.f32 %v1044, 0.0
      %v1171 = vmax.f32 %v1047, 0.0
      %v1172 = vmax.f32 %v1052, 0.0
      %v1173 = vmax.f32 %v1055, 0.0
      %v1174 = vmax.f32 %v1060, 0.0
      %v1175 = vmax.f32 %v1063, 0.0
      %v1176 = vmax.f32 %v1068, 0.0
      %v1177 = vmax.f32 %v1071, 0.0
      %v1178 = vmax.f32 %v1076, 0.0
      %v1179 = vmax.f32 %v1079, 0.0
      %v1180 = vmax.f32 %v1084, 0.0
      %v1181 = vmax.f32 %v1087, 0.0
      %v1182 = vmax.f32 %v1092, 0.0
      %v1183 = vmax.f32 %v1095, 0.0
      %v1184 = vmax.f32 %v1100, 0.0
      %v1185 = vmax.f32 %v1103, 0.0
      %v1186 = vmax.f32 %v1108, 0.0
      %v1187 = vmax.f32 %v1111, 0.0
      %v1188 = vmax.f32 %v1116, 0.0
      %v1189 = vmax.f32 %v1119, 0.0
      %v1190 = vmax.f32 %v1124, 0.0
      %v1191 = vmax.f32 %v1127, 0.0
      %v1192 = vmax.f32 %v1132, 0.0
      %v1193 = vmax.f32 %v1135, 0.0
      %v1194 = vmax.f32 %v1140, 0.0
      %v1195 = vmax.f32 %v1143, 0.0
      %v1196 = vmax.f32 %v1148, 0.0
      %v1197 = vmax.f32 %v1151, 0.0
      %v1198 = vmax.f32 %v1156, 0.0
      %v1199 = vmax.f32 %v1159, 0.0
      %v1200 = vmax.f32 %v1164, 0.0
      %v1201 = vmax.f32 %v1167, 0.0
      %v1202 = vpack.c.bf16 %v1171, %v1170
      %v1203 = vpack.c.bf16 %v1173, %v1172
      %v1204 = vpack.c.bf16 %v1175, %v1174
      %v1205 = vpack.c.bf16 %v1177, %v1176
      %v1206 = vpack.c.bf16 %v1179, %v1178
      %v1207 = vpack.c.bf16 %v1181, %v1180
      %v1208 = vpack.c.bf16 %v1183, %v1182
      %v1209 = vpack.c.bf16 %v1185, %v1184
      %v1210 = vpack.c.bf16 %v1187, %v1186
      %v1211 = vpack.c.bf16 %v1189, %v1188
      %v1212 = vpack.c.bf16 %v1191, %v1190
      %v1213 = vpack.c.bf16 %v1193, %v1192
      %v1214 = vpack.c.bf16 %v1195, %v1194
      %v1215 = vpack.c.bf16 %v1197, %v1196
      %v1216 = vpack.c.bf16 %v1199, %v1198
      %v1217 = vpack.c.bf16 %v1201, %v1200
      %v1218 = vld [vmem:[%s7] sm:$0xf]
      %v1219 = vld [vmem:[%s7 + $0x4] sm:$0xf]
      %v1220 = vld [vmem:[%s7 + $0x8] sm:$0xf]
      %v1221 = vld [vmem:[%s7 + $0xc] sm:$0xf]
      %v1222 = vld [vmem:[%s7 + $0x10] sm:$0xf]
      %v1223 = vld [vmem:[%s7 + $0x14] sm:$0xf]
      %v1224 = vld [vmem:[%s7 + $0x18] sm:$0xf]
      %v1225 = vld [vmem:[%s7 + $0x1c] sm:$0xf]
      %v1226 = vld [vmem:[%s7 + $0x20] sm:$0xf]
      %v1227 = vld [vmem:[%s7 + $0x24] sm:$0xf]
      %v1228 = vld [vmem:[%s7 + $0x28] sm:$0xf]
      %v1229 = vld [vmem:[%s7 + $0x2c] sm:$0xf]
      %v1230 = vld [vmem:[%s7 + $0x30] sm:$0xf]
      %v1231 = vld [vmem:[%s7 + $0x34] sm:$0xf]
      %v1232 = vld [vmem:[%s7 + $0x38] sm:$0xf]
      %v1233 = vld [vmem:[%s7 + $0x3c] sm:$0xf]
      %v1234 = vld [vmem:[%s8] sm:$0x1]
      %v1236 = vlaneseq
      %v1237 = vshrl.u32 %v1236, 7
      %v1238 = vsub.s32 0, %v1237
      %v1239 = vrot.slane %v1234, %v1238
      %v1257 = vunpack.c.l.b16 %v1218
      %v1258 = vunpack.c.l.b16 %v1219
      %v1259 = vunpack.c.l.b16 %v1220
      %v1260 = vunpack.c.l.b16 %v1221
      %v1261 = vunpack.c.l.b16 %v1222
      %v1262 = vunpack.c.l.b16 %v1223
      %v1263 = vunpack.c.l.b16 %v1224
      %v1264 = vunpack.c.l.b16 %v1225
      %v1265 = vunpack.c.l.b16 %v1226
      %v1266 = vunpack.c.l.b16 %v1227
      %v1267 = vunpack.c.l.b16 %v1228
      %v1268 = vunpack.c.l.b16 %v1229
      %v1269 = vunpack.c.l.b16 %v1230
      %v1270 = vunpack.c.l.b16 %v1231
      %v1271 = vunpack.c.l.b16 %v1232
      %v1272 = vunpack.c.l.b16 %v1233
      %v1273 = vpack.c.b16 %v1258, %v1257
      %v1274 = vpack.c.b16 %v1260, %v1259
      %v1275 = vpack.c.b16 %v1262, %v1261
      %v1276 = vpack.c.b16 %v1264, %v1263
      %v1277 = vpack.c.b16 %v1266, %v1265
      %v1278 = vpack.c.b16 %v1268, %v1267
      %v1279 = vpack.c.b16 %v1270, %v1269
      %v1280 = vpack.c.b16 %v1272, %v1271
      %1289 = vmatprep.subr.bf16.mxu0 0
      %1290 = vmatpush1.bf16.msra.mxu0 %v1273
      %1291 = vmatprep.subr.bf16.mxu0 0
      %1292 = vmatpush1.bf16.msra.mxu0 %v1274
      %1293 = vmatprep.subr.bf16.mxu0 0
      %1294 = vmatpush1.bf16.msra.mxu0 %v1275
      %1295 = vmatprep.subr.bf16.mxu0 0
      %1296 = vmatpush1.bf16.msra.mxu0 %v1276
      %1297 = vmatprep.subr.bf16.mxu0 0
      %1298 = vmatpush1.bf16.msra.mxu0 %v1277
      %1299 = vmatprep.subr.bf16.mxu0 0
      %1300 = vmatpush1.bf16.msra.mxu0 %v1278
      %1301 = vmatprep.subr.bf16.mxu0 0
      %1302 = vmatpush1.bf16.msra.mxu0 %v1279
      %1303 = vmatprep.subr.bf16.mxu0 0
      %1304 = vmatpush1.bf16.msra.mxu0 %v1280
      %1305 = vmatprep.subr.bf16.mxu0 0
      %1306 = vmatpush1.bf16.msra.mxu0 0
      %1307 = vmatprep.subr.bf16.mxu0 0
      %1308 = vmatpush1.bf16.msra.mxu0 0
      %1309 = vmatprep.subr.bf16.mxu0 0
      %1310 = vmatpush1.bf16.msra.mxu0 0
      %1311 = vmatprep.subr.bf16.mxu0 0
      %1312 = vmatpush1.bf16.msra.mxu0 0
      %1313 = vmatprep.subr.bf16.mxu0 0
      %1314 = vmatpush1.bf16.msra.mxu0 0
      %1315 = vmatprep.subr.bf16.mxu0 0
      %1316 = vmatpush1.bf16.msra.mxu0 0
      %1317 = vmatprep.subr.bf16.mxu0 0
      %1318 = vmatpush1.bf16.msra.mxu0 0
      %1319 = vmatprep.subr.bf16.mxu0 0
      %1320 = vmatpush1.bf16.msra.mxu0 0
      %1321 = vmatprep.mubr.bf16.mxu0 0
      %1322 = vmatmul.mubr.bf16.gmra.mrb[0].mxu0 %v1202
      %v1323 = vpop.f32.mrb[0].mxu0
      %v1324 = vadd.f32 %v1239, %v1323
      %v1325 = vpop.f32.mrb[0].mxu0
      %v1326 = vpop.f32.mrb[0].mxu0
      %v1327 = vadd.f32 %v1239, %v1326
      %v1328 = vpop.f32.mrb[0].mxu0
      %1329 = vmatprep.mubr.bf16.mxu0 0
      %1330 = vmatmul.mubr.bf16.gmra.mrb[0].mxu0 %v1203
      %v1331 = vpop.f32.mrb[0].mxu0
      %v1332 = vadd.f32 %v1239, %v1331
      %v1333 = vpop.f32.mrb[0].mxu0
      %v1334 = vpop.f32.mrb[0].mxu0
      %v1335 = vadd.f32 %v1239, %v1334
      %v1336 = vpop.f32.mrb[0].mxu0
      %1337 = vmatprep.mubr.bf16.mxu0 0
      %1338 = vmatmul.mubr.bf16.gmra.mrb[0].mxu0 %v1204
      %v1339 = vpop.f32.mrb[0].mxu0
      %v1340 = vadd.f32 %v1239, %v1339
      %v1341 = vpop.f32.mrb[0].mxu0
      %v1342 = vpop.f32.mrb[0].mxu0
      %v1343 = vadd.f32 %v1239, %v1342
      %v1344 = vpop.f32.mrb[0].mxu0
      %1345 = vmatprep.mubr.bf16.mxu0 0
      %1346 = vmatmul.mubr.bf16.gmra.mrb[0].mxu0 %v1205
      %v1347 = vpop.f32.mrb[0].mxu0
      %v1348 = vadd.f32 %v1239, %v1347
      %v1349 = vpop.f32.mrb[0].mxu0
      %v1350 = vpop.f32.mrb[0].mxu0
      %v1351 = vadd.f32 %v1239, %v1350
      %v1352 = vpop.f32.mrb[0].mxu0
      %1353 = vmatprep.mubr.bf16.mxu0 0
      %1354 = vmatmul.mubr.bf16.gmra.mrb[0].mxu0 %v1206
      %v1355 = vpop.f32.mrb[0].mxu0
      %v1356 = vadd.f32 %v1239, %v1355
      %v1357 = vpop.f32.mrb[0].mxu0
      %v1358 = vpop.f32.mrb[0].mxu0
      %v1359 = vadd.f32 %v1239, %v1358
      %v1360 = vpop.f32.mrb[0].mxu0
      %1361 = vmatprep.mubr.bf16.mxu0 0
      %1362 = vmatmul.mubr.bf16.gmra.mrb[0].mxu0 %v1207
      %v1363 = vpop.f32.mrb[0].mxu0
      %v1364 = vadd.f32 %v1239, %v1363
      %v1365 = vpop.f32.mrb[0].mxu0
      %v1366 = vpop.f32.mrb[0].mxu0
      %v1367 = vadd.f32 %v1239, %v1366
      %v1368 = vpop.f32.mrb[0].mxu0
      %1369 = vmatprep.mubr.bf16.mxu0 0
      %1370 = vmatmul.mubr.bf16.gmra.mrb[0].mxu0 %v1208
      %v1371 = vpop.f32.mrb[0].mxu0
      %v1372 = vadd.f32 %v1239, %v1371
      %v1373 = vpop.f32.mrb[0].mxu0
      %v1374 = vpop.f32.mrb[0].mxu0
      %v1375 = vadd.f32 %v1239, %v1374
      %v1376 = vpop.f32.mrb[0].mxu0
      %1377 = vmatprep.mubr.bf16.mxu0 0
      %1378 = vmatmul.mubr.bf16.gmra.mrb[0].mxu0 %v1209
      %v1379 = vpop.f32.mrb[0].mxu0
      %v1380 = vadd.f32 %v1239, %v1379
      %v1381 = vpop.f32.mrb[0].mxu0
      %v1382 = vpop.f32.mrb[0].mxu0
      %v1383 = vadd.f32 %v1239, %v1382
      %v1384 = vpop.f32.mrb[0].mxu0
      %1385 = vmatprep.mubr.bf16.mxu0 0
      %1386 = vmatmul.mubr.bf16.gmra.mrb[0].mxu0 %v1210
      %v1387 = vpop.f32.mrb[0].mxu0
      %v1388 = vadd.f32 %v1239, %v1387
      %v1389 = vpop.f32.mrb[0].mxu0
      %v1390 = vpop.f32.mrb[0].mxu0
      %v1391 = vadd.f32 %v1239, %v1390
      %v1392 = vpop.f32.mrb[0].mxu0
      %1393 = vmatprep.mubr.bf16.mxu0 0
      %1394 = vmatmul.mubr.bf16.gmra.mrb[0].mxu0 %v1211
      %v1395 = vpop.f32.mrb[0].mxu0
      %v1396 = vadd.f32 %v1239, %v1395
      %v1397 = vpop.f32.mrb[0].mxu0
      %v1398 = vpop.f32.mrb[0].mxu0
      %v1399 = vadd.f32 %v1239, %v1398
      %v1400 = vpop.f32.mrb[0].mxu0
      %1401 = vmatprep.mubr.bf16.mxu0 0
      %1402 = vmatmul.mubr.bf16.gmra.mrb[0].mxu0 %v1212
      %v1403 = vpop.f32.mrb[0].mxu0
      %v1404 = vadd.f32 %v1239, %v1403
      %v1405 = vpop.f32.mrb[0].mxu0
      %v1406 = vpop.f32.mrb[0].mxu0
      %v1407 = vadd.f32 %v1239, %v1406
      %v1408 = vpop.f32.mrb[0].mxu0
      %1409 = vmatprep.mubr.bf16.mxu0 0
      %1410 = vmatmul.mubr.bf16.gmra.mrb[0].mxu0 %v1213
      %v1411 = vpop.f32.mrb[0].mxu0
      %v1412 = vadd.f32 %v1239, %v1411
      %v1413 = vpop.f32.mrb[0].mxu0
      %v1414 = vpop.f32.mrb[0].mxu0
      %v1415 = vadd.f32 %v1239, %v1414
      %v1416 = vpop.f32.mrb[0].mxu0
      %1417 = vmatprep.mubr.bf16.mxu0 0
      %1418 = vmatmul.mubr.bf16.gmra.mrb[0].mxu0 %v1214
      %v1419 = vpop.f32.mrb[0].mxu0
      %v1420 = vadd.f32 %v1239, %v1419
      %v1421 = vpop.f32.mrb[0].mxu0
      %v1422 = vpop.f32.mrb[0].mxu0
      %v1423 = vadd.f32 %v1239, %v1422
      %v1424 = vpop.f32.mrb[0].mxu0
      %1425 = vmatprep.mubr.bf16.mxu0 0
      %1426 = vmatmul.mubr.bf16.gmra.mrb[0].mxu0 %v1215
      %v1427 = vpop.f32.mrb[0].mxu0
      %v1428 = vadd.f32 %v1239, %v1427
      %v1429 = vpop.f32.mrb[0].mxu0
      %v1430 = vpop.f32.mrb[0].mxu0
      %v1431 = vadd.f32 %v1239, %v1430
      %v1432 = vpop.f32.mrb[0].mxu0
      %1433 = vmatprep.mubr.bf16.mxu0 0
      %1434 = vmatmul.mubr.bf16.gmra.mrb[0].mxu0 %v1216
      %v1435 = vpop.f32.mrb[0].mxu0
      %v1436 = vadd.f32 %v1239, %v1435
      %v1437 = vpop.f32.mrb[0].mxu0
      %v1438 = vpop.f32.mrb[0].mxu0
      %v1439 = vadd.f32 %v1239, %v1438
      %v1440 = vpop.f32.mrb[0].mxu0
      %1441 = vmatprep.mubr.bf16.mxu0 0
      %1442 = vmatmul.mubr.bf16.gmra.mrb[0].mxu0 %v1217
      %v1443 = vpop.f32.mrb[0].mxu0
      %v1444 = vadd.f32 %v1239, %v1443
      %v1445 = vpop.f32.mrb[0].mxu0
      %v1446 = vpop.f32.mrb[0].mxu0
      %v1447 = vadd.f32 %v1239, %v1446
      %v1448 = vpop.f32.mrb[0].mxu0
      %1449 = vdwg.mxu0
      %vm1450 = vcmask 261120
      %1451 = vst.msk [vmem:[%s334] sm:$0xff] %vm1450, %v1324
      %1452 = vst.msk [vmem:[%s334 + $0x8] sm:$0xff] %vm1450, %v1327
      %1453 = vst.msk [vmem:[%s334 + $0x10] sm:$0xff] %vm1450, %v1332
      %1454 = vst.msk [vmem:[%s334 + $0x18] sm:$0xff] %vm1450, %v1335
      %1455 = vst.msk [vmem:[%s334 + $0x20] sm:$0xff] %vm1450, %v1340
      %1456 = vst.msk [vmem:[%s334 + $0x28] sm:$0xff] %vm1450, %v1343
      %1457 = vst.msk [vmem:[%s334 + $0x30] sm:$0xff] %vm1450, %v1348
      %1458 = vst.msk [vmem:[%s334 + $0x38] sm:$0xff] %vm1450, %v1351
      %1459 = vst.msk [vmem:[%s334 + $0x40] sm:$0xff] %vm1450, %v1356
      %1460 = vst.msk [vmem:[%s334 + $0x48] sm:$0xff] %vm1450, %v1359
      %1461 = vst.msk [vmem:[%s334 + $0x50] sm:$0xff] %vm1450, %v1364
      %1462 = vst.msk [vmem:[%s334 + $0x58] sm:$0xff] %vm1450, %v1367
      %1463 = vst.msk [vmem:[%s334 + $0x60] sm:$0xff] %vm1450, %v1372
      %1464 = vst.msk [vmem:[%s334 + $0x68] sm:$0xff] %vm1450, %v1375
      %1465 = vst.msk [vmem:[%s334 + $0x70] sm:$0xff] %vm1450, %v1380
      %1466 = vst.msk [vmem:[%s334 + $0x78] sm:$0xff] %vm1450, %v1383
      %1467 = vst.msk [vmem:[%s334 + $0x80] sm:$0xff] %vm1450, %v1388
      %1468 = vst.msk [vmem:[%s334 + $0x88] sm:$0xff] %vm1450, %v1391
      %1469 = vst.msk [vmem:[%s334 + $0x90] sm:$0xff] %vm1450, %v1396
      %1470 = vst.msk [vmem:[%s334 + $0x98] sm:$0xff] %vm1450, %v1399
      %1471 = vst.msk [vmem:[%s334 + $0xa0] sm:$0xff] %vm1450, %v1404
      %1472 = vst.msk [vmem:[%s334 + $0xa8] sm:$0xff] %vm1450, %v1407
      %1473 = vst.msk [vmem:[%s334 + $0xb0] sm:$0xff] %vm1450, %v1412
      %1474 = vst.msk [vmem:[%s334 + $0xb8] sm:$0xff] %vm1450, %v1415
      %1475 = vst.msk [vmem:[%s334 + $0xc0] sm:$0xff] %vm1450, %v1420
      %1476 = vst.msk [vmem:[%s334 + $0xc8] sm:$0xff] %vm1450, %v1423
      %1477 = vst.msk [vmem:[%s334 + $0xd0] sm:$0xff] %vm1450, %v1428
      %1478 = vst.msk [vmem:[%s334 + $0xd8] sm:$0xff] %vm1450, %v1431
      %1479 = vst.msk [vmem:[%s334 + $0xe0] sm:$0xff] %vm1450, %v1436
      %1480 = vst.msk [vmem:[%s334 + $0xe8] sm:$0xff] %vm1450, %v1439
      %1481 = vst.msk [vmem:[%s334 + $0xf0] sm:$0xff] %vm1450, %v1444
      %1482 = vst.msk [vmem:[%s334 + $0xf8] sm:$0xff] %vm1450, %v1447
      %s1483 = smul.u32 32, %s20
      %p1484 = scmp.lt.s32.totalorder %s1483, 255
      %s1485 = scalar_select %p1484, %s1483, 255
      %s1486 = smul.addr %s1485, 8
      %s1487 = scalar_lea.vmem %s9, %s1486
      // Predicated region
      $region57: #{tpu_custom_call.1} parent=55 // pred_check
        %p1488 = pneg %p232
      $region58: #{tpu_custom_call.1} parent=55 // pred_check_branch
        %1490 = sbr.rel (%p1488) target = $region60
      $region59: #{tpu_custom_call.1} parent=55 // pred_region
        %s1491 = smul.u32 32, %s20
      $region60: #{tpu_custom_call.1} parent=55 // pred_fallthru
        _
    $region56: #{tpu_custom_call.1} parent=5 // pred_fallthru
      _
    %p1492 = scmp.le.s32.totalorder 2, %s15
    // Predicated region
    $region61: #{tpu_custom_call.1} parent=5 // pred_check
      %p1493 = pneg %p1492
    $region62: #{tpu_custom_call.1} parent=5 // pred_check_branch
      %1495 = sbr.rel (%p1493) target = $region64
    $region63: #{tpu_custom_call.1} parent=5 // pred_region
      %s1496 = ssub.s32 %s15, 2
      // Predicated region
      $region65: #{tpu_custom_call.1} parent=63 // pred_check
        %p1497 = pneg %p238
      $region66: #{tpu_custom_call.1} parent=63 // pred_check_branch
        %1499 = sbr.rel (%p1497) target = $region68
      $region67: #{tpu_custom_call.1} parent=63 // pred_region
        %s1500 = smul.u32 32, %s21
        %p1501 = scmp.lt.s32.totalorder %s1500, 255
        %s1502 = scalar_select %p1501, %s1500, 255
        %s1503 = smul.addr %s1502, 8
        %s1504 = scalar_lea.vmem %s9, %s1503
      $region68: #{tpu_custom_call.1} parent=63 // pred_fallthru
        _
    $region64: #{tpu_custom_call.1} parent=5 // pred_fallthru
      _
  $region6: #{tpu_custom_call.1} parent=0 // loop_footer
    %s19 = sadd.s32 1, %s15
  $region7: #{tpu_custom_call.1} parent=0 // loop_footer_branch
    %14 = sbr.rel target = $region3
  $region8: #{tpu_custom_call.1} parent=0 // loop_exit
    _

</llo_original>
